<compile_context>
chip_gen: v7x
topology: tpu7x:2x2x1
jax: 0.10.0
libtpu: 0.0.40
codegen_flags: <defaults>
</compile_context>

<pallas_src>
import jax
import jax.numpy as jnp
from jax.experimental import pallas as pl
from jax.experimental.pallas import tpu as pltpu


def _round_up(v, m):
    return (v + m - 1) // m * m


# ----------------------------- fused forward (Pallas) ------------------------
def gnn_forward_pallas(x, params, *, tile_rows=8):
    """x: (N, input_dim) f32 node features -> (E,) edge probs, E = N(N-1)/2."""
    n, din = x.shape
    ti = tile_rows
    assert n % ti == 0, "node count must be a multiple of the row tile"
    g = n // ti
    emb = params["convs"][0][0].shape[1]
    fc = params["lin_w"][0].shape[1]
    num_convs = len(params["convs"])
    num_middle = len(params["lin_w"]) - 2
    f32 = jnp.float32

    # Lane-dense output: pad the dest-node axis so ti * n_pad is a multiple of 128.
    lane = _round_up(ti * n, 128)
    assert lane % ti == 0, "tile_rows must divide the padded lane width"
    n_pad = lane // ti

    # Grid = (outer "parallel", inner "arbitrary").  outer=2 gives v7x megacore
    # sharding (shared work recomputed once per core); single-TC chips use outer=1.
    outer = 2 if (g >= 4 and g % 2 == 0) else 1
    inner = g // outer

    # ------------------- kernel arguments (transposed layout) ----------------
    args, in_specs = [], []

    def add(a):
        a = jnp.asarray(a, f32)
        args.append(a)
        in_specs.append(pl.BlockSpec(a.shape, lambda o, i: (0, 0)))

    add(x.T)                                                # (Din, N)
    for (w_rel, w_root, b) in params["convs"]:
        add(w_root.T)                                       # (Cout, Cin)
        add(w_rel.T)                                        # (Cout, Cin)
        add(b.T)                                            # (Cout, 1)
    w0, b0 = params["lin_w"][0], params["lin_b"][0]
    add(w0[:emb, :].T)                                      # (FC, EMB)  source half
    add(w0[emb:, :].T)                                      # (FC, EMB)  dest half
    add(b0.T)                                               # (FC, 1)
    for w, b in zip(params["lin_w"][1:-1], params["lin_b"][1:-1]):
        add(w.T)                                            # (FC, FC)
        add(b.T)                                            # (FC, 1)
    add(params["lin_w"][-1])                                # (FC, 1)  last-layer weight
    add(params["lin_b"][-1])                                # (1, 1)
    num_in = len(args)

    # --------------------------------- kernel --------------------------------
    def kernel(*refs):
        ins = refs[:num_in]
        out_ref = refs[num_in]
        hsrc_scr, hdst_scr = refs[num_in + 1], refs[num_in + 2]
        it = iter(ins)
        x_ref = next(it)
        conv_refs = [(next(it), next(it), next(it)) for _ in range(num_convs)]
        w0s_ref, w0d_ref, b0_ref = next(it), next(it), next(it)
        mid_refs = [(next(it), next(it)) for _ in range(num_middle)]
        wl_ref, bl_ref = next(it), next(it)

        # ---- one-time shared work (per "parallel" core slice) ----------------
        @pl.when(pl.program_id(1) == 0)
        def _():
            h = x_ref[...]                                   # (Cin, N)
            for (w_root_t, w_rel_t, b_col) in conv_refs:
                agg = jnp.mean(h, axis=1, keepdims=True)     # (Cin, 1)  adj == ones
                rel = jnp.dot(w_rel_t[...], agg,
                              preferred_element_type=f32)    # (Cout, 1) rank-1 fold
                z = jnp.dot(w_root_t[...], h,
                            preferred_element_type=f32)      # (Cout, N)
                h = jnp.maximum(z + rel + b_col[...], 0.0)   # ReLU; dropout = id (eval)
            hsrc = jnp.dot(w0s_ref[...], h,
                           preferred_element_type=f32)       # (FC, N)
            hdst = jnp.dot(w0d_ref[...], h,
                           preferred_element_type=f32)       # (FC, N)
            if n_pad > n:
                hdst = jnp.concatenate(
                    [hdst, jnp.zeros((fc, n_pad - n), f32)], axis=1)
            hdst_scr[...] = hdst                             # (FC, N_pad)
            for tt in range(g):                              # static lane slices only
                hsrc_scr[tt] = hsrc[:, tt * ti:(tt + 1) * ti]

        # ---- per-step pairwise head: TI source rows x N_pad dest columns -----
        t = pl.program_id(0) * inner + pl.program_id(1)
        hsrc_tile = hsrc_scr[t]                              # (FC, TI)  leading-dim index
        src_rep = jnp.concatenate(
            [jnp.broadcast_to(hsrc_tile[:, k:k + 1], (fc, n_pad)) for k in range(ti)],
            axis=1)                                          # (FC, TI*N_pad)
        dst_rep = jnp.concatenate([hdst_scr[...]] * ti, axis=1)  # (FC, TI*N_pad)
        a = jnp.maximum(src_rep + dst_rep + b0_ref[...], 0.0)
        for (w_t, b_c) in mid_refs:
            a = jnp.maximum(
                jnp.dot(w_t[...], a, preferred_element_type=f32) + b_c[...], 0.0)
        logits = jnp.sum(a * wl_ref[...], axis=0, keepdims=True) + bl_ref[...]
        out_ref[0] = jax.nn.sigmoid(logits)                  # (1, TI*N_pad) lane-dense

    # ------------------------- advisory cost estimate ------------------------
    conv_flops, cin = 0, din
    for _ in range(num_convs):
        conv_flops += 2 * emb * cin * (n + 1)
        cin = emb
    shared = conv_flops + 2 * (2 * fc) * emb * n
    per_step = num_middle * 2 * fc * fc * lane + 4 * fc * lane
    cost = pl.CostEstimate(
        flops=int(outer * shared + g * per_step),
        transcendentals=int(g * lane),
        bytes_accessed=int(sum(int(a.size) for a in args) * 4 + g * lane * 4))

    out = pl.pallas_call(
        kernel,
        grid=(outer, inner),
        out_shape=jax.ShapeDtypeStruct((g, 1, lane), f32),
        in_specs=in_specs,
        out_specs=pl.BlockSpec((1, 1, lane), lambda o, i: (o * inner + i, 0, 0)),
        scratch_shapes=[pltpu.VMEM((g, fc, ti), f32),        # per-tile src projections
                        pltpu.VMEM((fc, n_pad), f32)],       # dest projections (padded)
        compiler_params=pltpu.CompilerParams(
            dimension_semantics=("parallel", "arbitrary")),
        cost_estimate=cost,
    )(*args)

    # out[t, 0, k*N_pad + j] = prob(source i = t*TI + k, dest j)
    prob_mat = out.reshape(n, n_pad)[:, :n]
    iu, ju = jnp.triu_indices(n, k=1)
    # TODO(synk): triu packing of the small (N, N) prob matrix stays in XLA; at large
    # N a 2-D (src, dst) grid skipping lower-triangle tiles would halve head work.
    return prob_mat[iu, ju]


# ----------------------------- pure-JAX reference ----------------------------
def gnn_reference(x, params):
    h = x
    for (w_rel, w_root, b) in params["convs"]:
        agg = jnp.mean(h, axis=0, keepdims=True)
        h = jax.nn.relu(h @ w_root + agg @ w_rel + b)
    n = h.shape[0]
    iu, ju = jnp.triu_indices(n, k=1)
    o = jnp.concatenate([h[iu], h[ju]], axis=1)
    ws, bs = params["lin_w"], params["lin_b"]
    for w, b in zip(ws[:-1], bs[:-1]):
        o = jax.nn.relu(o @ w + b)
    o = jax.nn.sigmoid(o @ ws[-1] + bs[-1])
    return o[:, 0]


# ----------------------------- deterministic params --------------------------
def init_params(key, input_dim, emb_features, num_gnn_layers,
                fc_features, num_fc_layers):
    params = {"convs": [], "lin_w": [], "lin_b": []}
    dims_in = [input_dim] + [emb_features] * (num_gnn_layers - 1)
    for cin in dims_in:
        key, k1, k2, k3 = jax.random.split(key, 4)
        s = 1.0 / jnp.sqrt(jnp.float32(cin))
        w_rel = jax.random.uniform(k1, (cin, emb_features), jnp.float32, -s, s)
        w_root = jax.random.uniform(k2, (cin, emb_features), jnp.float32, -s, s)
        b = jax.random.uniform(k3, (1, emb_features), jnp.float32, -s, s)
        params["convs"].append((w_rel, w_root, b))
    fc_dims = [2 * emb_features] + [fc_features] * (num_fc_layers - 1) + [1]
    for li in range(num_fc_layers):
        cin, cout = fc_dims[li], fc_dims[li + 1]
        key, k1, k2 = jax.random.split(key, 3)
        s = 1.0 / jnp.sqrt(jnp.float32(cin))
        params["lin_w"].append(jax.random.uniform(k1, (cin, cout), jnp.float32, -s, s))
        params["lin_b"].append(jax.random.uniform(k2, (1, cout), jnp.float32, -s, s))
    return params


# ----------------------------- main -------------------------------------------
if __name__ == "__main__":
    N = 16               # number of nodes
    INPUT_DIM = 16       # 2 * Max_part_id ("two-hot" features)
    EMB = 32             # emb_features
    NUM_GNN_LAYERS = 2
    FC = 32              # fc_features
    NUM_FC_LAYERS = 3    # lins: [2*EMB->FC, FC->FC, FC->1]
    # dropout = 0.1      # identity at inference

    key = jax.random.PRNGKey(0)
    key, kx = jax.random.split(key)
    x = jax.random.uniform(kx, (N, INPUT_DIM), jnp.float32)
    params = init_params(key, INPUT_DIM, EMB, NUM_GNN_LAYERS, FC, NUM_FC_LAYERS)

    out = jax.block_until_ready(jax.jit(gnn_forward_pallas)(x, params))
    ref = jax.block_until_ready(gnn_reference(x, params))

    E = N * (N - 1) // 2
    assert out.shape == (E,), out.shape
    assert bool(jnp.all(jnp.isfinite(out)))
    assert bool(jnp.all((out >= 0.0) & (out <= 1.0)))
    assert bool(jnp.allclose(out, ref, atol=1e-3, rtol=1e-3)), (out, ref)

    print("KERNEL_OK")
</pallas_src>

<mosaic_0001>
module attributes {stable_mosaic.version = 11 : i64} {
  func.func private @main(%arg0: i32) attributes {dimension_semantics = [#tpu.dimension_semantics<core_parallel>], iteration_bounds = array<i64: 2>, tpu.core_type = #tpu.core_type<sc_scalar_subcore>, window_params = []} {
    return
  }
}

module attributes {stable_mosaic.version = 11 : i64} {
  func.func private @main(%arg0: i32) attributes {dimension_semantics = [#tpu.dimension_semantics<core_parallel>], iteration_bounds = array<i64: 2>, tpu.core_type = #tpu.core_type<sc_scalar_subcore>, window_params = []} {
    return
  }
}

module attributes {stable_mosaic.version = 11 : i64} {
  func.func @kernel(%arg0: i32, %arg1: i32, %arg2: memref<16x16xf32, #tpu.memory_space<vmem>>, %arg3: memref<32x16xf32, #tpu.memory_space<vmem>>, %arg4: memref<32x16xf32, #tpu.memory_space<vmem>>, %arg5: memref<32x1xf32, #tpu.memory_space<vmem>>, %arg6: memref<32x32xf32, #tpu.memory_space<vmem>>, %arg7: memref<32x32xf32, #tpu.memory_space<vmem>>, %arg8: memref<32x1xf32, #tpu.memory_space<vmem>>, %arg9: memref<32x32xf32, #tpu.memory_space<vmem>>, %arg10: memref<32x32xf32, #tpu.memory_space<vmem>>, %arg11: memref<32x1xf32, #tpu.memory_space<vmem>>, %arg12: memref<32x32xf32, #tpu.memory_space<vmem>>, %arg13: memref<32x1xf32, #tpu.memory_space<vmem>>, %arg14: memref<32x1xf32, #tpu.memory_space<vmem>>, %arg15: memref<1x1xf32, #tpu.memory_space<vmem>>, %arg16: memref<1x1x128xf32, #tpu.memory_space<vmem>>, %arg17: memref<2x32x8xf32, #tpu.memory_space<vmem>>, %arg18: memref<32x16xf32, #tpu.memory_space<vmem>>) attributes {dimension_semantics = [#tpu.dimension_semantics<parallel>, #tpu.dimension_semantics<arbitrary>], iteration_bounds = array<i64: 1, 2>, scalar_prefetch = 0 : i64, scratch_operands = 2 : i64, tpu.core_type = #tpu.core_type<tc>, window_params = [{pipeline_mode = #tpu.pipeline_mode<synchronous>, transform_indices = @transform_0, window_bounds = array<i64: 16, 16>}, {pipeline_mode = #tpu.pipeline_mode<synchronous>, transform_indices = @transform_1, window_bounds = array<i64: 32, 16>}, {pipeline_mode = #tpu.pipeline_mode<synchronous>, transform_indices = @transform_2, window_bounds = array<i64: 32, 16>}, {pipeline_mode = #tpu.pipeline_mode<synchronous>, transform_indices = @transform_3, window_bounds = array<i64: 32, 1>}, {pipeline_mode = #tpu.pipeline_mode<synchronous>, transform_indices = @transform_4, window_bounds = array<i64: 32, 32>}, {pipeline_mode = #tpu.pipeline_mode<synchronous>, transform_indices = @transform_5, window_bounds = array<i64: 32, 32>}, {pipeline_mode = #tpu.pipeline_mode<synchronous>, transform_indices = @transform_6, window_bounds = array<i64: 32, 1>}, {pipeline_mode = #tpu.pipeline_mode<synchronous>, transform_indices = @transform_7, window_bounds = array<i64: 32, 32>}, {pipeline_mode = #tpu.pipeline_mode<synchronous>, transform_indices = @transform_8, window_bounds = array<i64: 32, 32>}, {pipeline_mode = #tpu.pipeline_mode<synchronous>, transform_indices = @transform_9, window_bounds = array<i64: 32, 1>}, {pipeline_mode = #tpu.pipeline_mode<synchronous>, transform_indices = @transform_10, window_bounds = array<i64: 32, 32>}, {pipeline_mode = #tpu.pipeline_mode<synchronous>, transform_indices = @transform_11, window_bounds = array<i64: 32, 1>}, {pipeline_mode = #tpu.pipeline_mode<synchronous>, transform_indices = @transform_12, window_bounds = array<i64: 32, 1>}, {pipeline_mode = #tpu.pipeline_mode<synchronous>, transform_indices = @transform_13, window_bounds = array<i64: 1, 1>}, {transform_indices = @transform_14, window_bounds = array<i64: 1, 1, 128>}]} {
    %c0_i32 = arith.constant 0 : i32
    %0 = arith.cmpi eq, %arg1, %c0_i32 : i32
    %1 = arith.extui %0 : i1 to i32
    %c0_i32_0 = arith.constant 0 : i32
    %2 = arith.cmpi ne, %1, %c0_i32_0 : i32
    scf.if %2 {
      %c0_21 = arith.constant 0 : index
      %c0_22 = arith.constant 0 : index
      %64 = vector.load %arg2[%c0_21, %c0_22] : memref<16x16xf32, #tpu.memory_space<vmem>>, vector<16x16xf32>
      %cst_23 = arith.constant dense<0.000000e+00> : vector<16xf32>
      %65 = vector.multi_reduction <add>, %64, %cst_23 [1] : vector<16x16xf32> to vector<16xf32>
      %66 = vector.shape_cast %65 : vector<16xf32> to vector<16x1xf32>
      %cst_24 = arith.constant 1.600000e+01 : f32
      %67 = vector.broadcast %cst_24 : f32 to vector<16x1xf32>
      %68 = arith.divf %66, %67 : vector<16x1xf32>
      %c0_25 = arith.constant 0 : index
      %c0_26 = arith.constant 0 : index
      %69 = vector.load %arg4[%c0_25, %c0_26] : memref<32x16xf32, #tpu.memory_space<vmem>>, vector<32x16xf32>
      %cst_27 = arith.constant dense<0.000000e+00> : vector<32x1xf32>
      %70 = tpu.matmul %69, %68, %cst_27 {dimension_numbers = #tpu.dot_dimension_numbers<[1], [0], [0], [1], [0, 0, 1, 1], [], []>} : vector<32x16xf32>, vector<16x1xf32>, vector<32x1xf32> -> vector<32x1xf32>
      %c0_28 = arith.constant 0 : index
      %c0_29 = arith.constant 0 : index
      %71 = vector.load %arg3[%c0_28, %c0_29] : memref<32x16xf32, #tpu.memory_space<vmem>>, vector<32x16xf32>
      %cst_30 = arith.constant dense<0.000000e+00> : vector<32x16xf32>
      %72 = tpu.matmul %71, %64, %cst_30 {dimension_numbers = #tpu.dot_dimension_numbers<[1], [0], [0], [1], [0, 0, 1, 1], [], []>} : vector<32x16xf32>, vector<16x16xf32>, vector<32x16xf32> -> vector<32x16xf32>
      %73 = vector.broadcast %70 : vector<32x1xf32> to vector<32x16xf32>
      %74 = arith.addf %72, %73 : vector<32x16xf32>
      %c0_31 = arith.constant 0 : index
      %c0_32 = arith.constant 0 : index
      %75 = vector.load %arg5[%c0_31, %c0_32] : memref<32x1xf32, #tpu.memory_space<vmem>>, vector<32x1xf32>
      %76 = vector.broadcast %75 : vector<32x1xf32> to vector<32x16xf32>
      %77 = arith.addf %74, %76 : vector<32x16xf32>
      %cst_33 = arith.constant 0.000000e+00 : f32
      %78 = vector.broadcast %cst_33 : f32 to vector<32x16xf32>
      %79 = arith.maximumf %77, %78 : vector<32x16xf32>
      %cst_34 = arith.constant dense<0.000000e+00> : vector<32xf32>
      %80 = vector.multi_reduction <add>, %79, %cst_34 [1] : vector<32x16xf32> to vector<32xf32>
      %81 = vector.shape_cast %80 : vector<32xf32> to vector<32x1xf32>
      %cst_35 = arith.constant 1.600000e+01 : f32
      %82 = vector.broadcast %cst_35 : f32 to vector<32x1xf32>
      %83 = arith.divf %81, %82 : vector<32x1xf32>
      %c0_36 = arith.constant 0 : index
      %c0_37 = arith.constant 0 : index
      %84 = vector.load %arg7[%c0_36, %c0_37] : memref<32x32xf32, #tpu.memory_space<vmem>>, vector<32x32xf32>
      %cst_38 = arith.constant dense<0.000000e+00> : vector<32x1xf32>
      %85 = tpu.matmul %84, %83, %cst_38 {dimension_numbers = #tpu.dot_dimension_numbers<[1], [0], [0], [1], [0, 0, 1, 1], [], []>} : vector<32x32xf32>, vector<32x1xf32>, vector<32x1xf32> -> vector<32x1xf32>
      %c0_39 = arith.constant 0 : index
      %c0_40 = arith.constant 0 : index
      %86 = vector.load %arg6[%c0_39, %c0_40] : memref<32x32xf32, #tpu.memory_space<vmem>>, vector<32x32xf32>
      %cst_41 = arith.constant dense<0.000000e+00> : vector<32x16xf32>
      %87 = tpu.matmul %86, %79, %cst_41 {dimension_numbers = #tpu.dot_dimension_numbers<[1], [0], [0], [1], [0, 0, 1, 1], [], []>} : vector<32x32xf32>, vector<32x16xf32>, vector<32x16xf32> -> vector<32x16xf32>
      %88 = vector.broadcast %85 : vector<32x1xf32> to vector<32x16xf32>
      %89 = arith.addf %87, %88 : vector<32x16xf32>
      %c0_42 = arith.constant 0 : index
      %c0_43 = arith.constant 0 : index
      %90 = vector.load %arg8[%c0_42, %c0_43] : memref<32x1xf32, #tpu.memory_space<vmem>>, vector<32x1xf32>
      %91 = vector.broadcast %90 : vector<32x1xf32> to vector<32x16xf32>
      %92 = arith.addf %89, %91 : vector<32x16xf32>
      %cst_44 = arith.constant 0.000000e+00 : f32
      %93 = vector.broadcast %cst_44 : f32 to vector<32x16xf32>
      %94 = arith.maximumf %92, %93 : vector<32x16xf32>
      %c0_45 = arith.constant 0 : index
      %c0_46 = arith.constant 0 : index
      %95 = vector.load %arg9[%c0_45, %c0_46] : memref<32x32xf32, #tpu.memory_space<vmem>>, vector<32x32xf32>
      %cst_47 = arith.constant dense<0.000000e+00> : vector<32x16xf32>
      %96 = tpu.matmul %95, %94, %cst_47 {dimension_numbers = #tpu.dot_dimension_numbers<[1], [0], [0], [1], [0, 0, 1, 1], [], []>} : vector<32x32xf32>, vector<32x16xf32>, vector<32x16xf32> -> vector<32x16xf32>
      %c0_48 = arith.constant 0 : index
      %c0_49 = arith.constant 0 : index
      %97 = vector.load %arg10[%c0_48, %c0_49] : memref<32x32xf32, #tpu.memory_space<vmem>>, vector<32x32xf32>
      %cst_50 = arith.constant dense<0.000000e+00> : vector<32x16xf32>
      %98 = tpu.matmul %97, %94, %cst_50 {dimension_numbers = #tpu.dot_dimension_numbers<[1], [0], [0], [1], [0, 0, 1, 1], [], []>} : vector<32x32xf32>, vector<32x16xf32>, vector<32x16xf32> -> vector<32x16xf32>
      %c0_51 = arith.constant 0 : index
      %c0_52 = arith.constant 0 : index
      %99 = vector.load %arg18[%c0_51, %c0_52] : memref<32x16xf32, #tpu.memory_space<vmem>>, vector<32x16xf32>
      tpu.vector_store %arg18[%c0_51, %c0_52], %98 {strides = array<i32>} : memref<32x16xf32, #tpu.memory_space<vmem>>, vector<32x16xf32>,
      %100 = vector.extract_strided_slice %96 {offsets = [0, 0], sizes = [32, 8], strides = [1, 1]} : vector<32x16xf32> to vector<32x8xf32>
      %c0_53 = arith.constant 0 : index
      %c0_54 = arith.constant 0 : index
      %c0_55 = arith.constant 0 : index
      %101 = vector.load %arg17[%c0_53, %c0_54, %c0_55] : memref<2x32x8xf32, #tpu.memory_space<vmem>>, vector<1x32x8xf32>
      %102 = vector.shape_cast %101 : vector<1x32x8xf32> to vector<32x8xf32>
      %103 = vector.shape_cast %100 : vector<32x8xf32> to vector<1x32x8xf32>
      tpu.vector_store %arg17[%c0_53, %c0_54, %c0_55], %103 {strides = array<i32>} : memref<2x32x8xf32, #tpu.memory_space<vmem>>, vector<1x32x8xf32>,
      %104 = vector.extract_strided_slice %96 {offsets = [0, 8], sizes = [32, 8], strides = [1, 1]} : vector<32x16xf32> to vector<32x8xf32>
      %c1 = arith.constant 1 : index
      %c0_56 = arith.constant 0 : index
      %c0_57 = arith.constant 0 : index
      %105 = vector.load %arg17[%c1, %c0_56, %c0_57] : memref<2x32x8xf32, #tpu.memory_space<vmem>>, vector<1x32x8xf32>
      %106 = vector.shape_cast %105 : vector<1x32x8xf32> to vector<32x8xf32>
      %107 = vector.shape_cast %104 : vector<32x8xf32> to vector<1x32x8xf32>
      tpu.vector_store %arg17[%c1, %c0_56, %c0_57], %107 {strides = array<i32>} : memref<2x32x8xf32, #tpu.memory_space<vmem>>, vector<1x32x8xf32>,
    } else {
    }
    %c2_i32 = arith.constant 2 : i32
    %3 = arith.muli %arg0, %c2_i32 : i32
    %4 = arith.addi %3, %arg1 : i32
    %5 = arith.index_cast %4 : i32 to index
    %c0 = arith.constant 0 : index
    %c0_1 = arith.constant 0 : index
    %6 = vector.load %arg17[%5, %c0, %c0_1] : memref<2x32x8xf32, #tpu.memory_space<vmem>>, vector<1x32x8xf32>
    %7 = vector.shape_cast %6 : vector<1x32x8xf32> to vector<32x8xf32>
    %8 = vector.extract_strided_slice %7 {offsets = [0, 0], sizes = [32, 1], strides = [1, 1]} : vector<32x8xf32> to vector<32x1xf32>
    %9 = vector.shape_cast %8 : vector<32x1xf32> to vector<32x1xf32>
    %10 = vector.broadcast %9 : vector<32x1xf32> to vector<32x16xf32>
    %11 = vector.extract_strided_slice %7 {offsets = [0, 1], sizes = [32, 1], strides = [1, 1]} : vector<32x8xf32> to vector<32x1xf32>
    %12 = vector.shape_cast %11 : vector<32x1xf32> to vector<32x1xf32>
    %13 = vector.broadcast %12 : vector<32x1xf32> to vector<32x16xf32>
    %14 = vector.extract_strided_slice %7 {offsets = [0, 2], sizes = [32, 1], strides = [1, 1]} : vector<32x8xf32> to vector<32x1xf32>
    %15 = vector.shape_cast %14 : vector<32x1xf32> to vector<32x1xf32>
    %16 = vector.broadcast %15 : vector<32x1xf32> to vector<32x16xf32>
    %17 = vector.extract_strided_slice %7 {offsets = [0, 3], sizes = [32, 1], strides = [1, 1]} : vector<32x8xf32> to vector<32x1xf32>
    %18 = vector.shape_cast %17 : vector<32x1xf32> to vector<32x1xf32>
    %19 = vector.broadcast %18 : vector<32x1xf32> to vector<32x16xf32>
    %20 = vector.extract_strided_slice %7 {offsets = [0, 4], sizes = [32, 1], strides = [1, 1]} : vector<32x8xf32> to vector<32x1xf32>
    %21 = vector.shape_cast %20 : vector<32x1xf32> to vector<32x1xf32>
    %22 = vector.broadcast %21 : vector<32x1xf32> to vector<32x16xf32>
    %23 = vector.extract_strided_slice %7 {offsets = [0, 5], sizes = [32, 1], strides = [1, 1]} : vector<32x8xf32> to vector<32x1xf32>
    %24 = vector.shape_cast %23 : vector<32x1xf32> to vector<32x1xf32>
    %25 = vector.broadcast %24 : vector<32x1xf32> to vector<32x16xf32>
    %26 = vector.extract_strided_slice %7 {offsets = [0, 6], sizes = [32, 1], strides = [1, 1]} : vector<32x8xf32> to vector<32x1xf32>
    %27 = vector.shape_cast %26 : vector<32x1xf32> to vector<32x1xf32>
    %28 = vector.broadcast %27 : vector<32x1xf32> to vector<32x16xf32>
    %29 = vector.extract_strided_slice %7 {offsets = [0, 7], sizes = [32, 1], strides = [1, 1]} : vector<32x8xf32> to vector<32x1xf32>
    %30 = vector.shape_cast %29 : vector<32x1xf32> to vector<32x1xf32>
    %31 = vector.broadcast %30 : vector<32x1xf32> to vector<32x16xf32>
    %32 = tpu.concatenate %10, %13, %16, %19, %22, %25, %28, %31 in 1 : vector<32x16xf32>, vector<32x16xf32>, vector<32x16xf32>, vector<32x16xf32>, vector<32x16xf32>, vector<32x16xf32>, vector<32x16xf32>, vector<32x16xf32> -> vector<32x128xf32>
    %c0_2 = arith.constant 0 : index
    %c0_3 = arith.constant 0 : index
    %33 = vector.load %arg18[%c0_2, %c0_3] : memref<32x16xf32, #tpu.memory_space<vmem>>, vector<32x16xf32>
    %34 = tpu.concatenate %33, %33, %33, %33, %33, %33, %33, %33 in 1 : vector<32x16xf32>, vector<32x16xf32>, vector<32x16xf32>, vector<32x16xf32>, vector<32x16xf32>, vector<32x16xf32>, vector<32x16xf32>, vector<32x16xf32> -> vector<32x128xf32>
    %35 = arith.addf %32, %34 : vector<32x128xf32>
    %c0_4 = arith.constant 0 : index
    %c0_5 = arith.constant 0 : index
    %36 = vector.load %arg11[%c0_4, %c0_5] : memref<32x1xf32, #tpu.memory_space<vmem>>, vector<32x1xf32>
    %37 = vector.broadcast %36 : vector<32x1xf32> to vector<32x128xf32>
    %38 = arith.addf %35, %37 : vector<32x128xf32>
    %cst = arith.constant 0.000000e+00 : f32
    %39 = vector.broadcast %cst : f32 to vector<32x128xf32>
    %40 = arith.maximumf %38, %39 : vector<32x128xf32>
    %c0_6 = arith.constant 0 : index
    %c0_7 = arith.constant 0 : index
    %41 = vector.load %arg12[%c0_6, %c0_7] : memref<32x32xf32, #tpu.memory_space<vmem>>, vector<32x32xf32>
    %cst_8 = arith.constant dense<0.000000e+00> : vector<32x128xf32>
    %42 = tpu.matmul %41, %40, %cst_8 {dimension_numbers = #tpu.dot_dimension_numbers<[1], [0], [0], [1], [0, 0, 1, 1], [], []>} : vector<32x32xf32>, vector<32x128xf32>, vector<32x128xf32> -> vector<32x128xf32>
    %c0_9 = arith.constant 0 : index
    %c0_10 = arith.constant 0 : index
    %43 = vector.load %arg13[%c0_9, %c0_10] : memref<32x1xf32, #tpu.memory_space<vmem>>, vector<32x1xf32>
    %44 = vector.broadcast %43 : vector<32x1xf32> to vector<32x128xf32>
    %45 = arith.addf %42, %44 : vector<32x128xf32>
    %cst_11 = arith.constant 0.000000e+00 : f32
    %46 = vector.broadcast %cst_11 : f32 to vector<32x128xf32>
    %47 = arith.maximumf %45, %46 : vector<32x128xf32>
    %c0_12 = arith.constant 0 : index
    %c0_13 = arith.constant 0 : index
    %48 = vector.load %arg14[%c0_12, %c0_13] : memref<32x1xf32, #tpu.memory_space<vmem>>, vector<32x1xf32>
    %49 = vector.broadcast %48 : vector<32x1xf32> to vector<32x128xf32>
    %50 = arith.mulf %47, %49 : vector<32x128xf32>
    %cst_14 = arith.constant dense<0.000000e+00> : vector<128xf32>
    %51 = vector.multi_reduction <add>, %50, %cst_14 [0] : vector<32x128xf32> to vector<128xf32>
    %52 = vector.shape_cast %51 : vector<128xf32> to vector<1x128xf32>
    %c0_15 = arith.constant 0 : index
    %c0_16 = arith.constant 0 : index
    %53 = vector.load %arg15[%c0_15, %c0_16] : memref<1x1xf32, #tpu.memory_space<vmem>>, vector<1x1xf32>
    %54 = vector.broadcast %53 : vector<1x1xf32> to vector<1x128xf32>
    %55 = arith.addf %52, %54 : vector<1x128xf32>
    %56 = arith.negf %55 : vector<1x128xf32>
    %57 = math.exp %56 : vector<1x128xf32>
    %cst_17 = arith.constant 1.000000e+00 : f32
    %58 = vector.broadcast %cst_17 : f32 to vector<1x128xf32>
    %59 = arith.addf %58, %57 : vector<1x128xf32>
    %60 = arith.divf %58, %59 : vector<1x128xf32>
    %c0_18 = arith.constant 0 : index
    %c0_19 = arith.constant 0 : index
    %c0_20 = arith.constant 0 : index
    %61 = vector.load %arg16[%c0_18, %c0_19, %c0_20] : memref<1x1x128xf32, #tpu.memory_space<vmem>>, vector<1x1x128xf32>
    %62 = vector.shape_cast %61 : vector<1x1x128xf32> to vector<1x128xf32>
    %63 = vector.shape_cast %60 : vector<1x128xf32> to vector<1x1x128xf32>
    tpu.vector_store %arg16[%c0_18, %c0_19, %c0_20], %63 {strides = array<i32>} : memref<1x1x128xf32, #tpu.memory_space<vmem>>, vector<1x1x128xf32>,
    return
  }
  func.func @transform_0(%arg0: i32, %arg1: i32) -> (i32, i32) {
    %c0_i32 = arith.constant 0 : i32
    %c0_i32_0 = arith.constant 0 : i32
    %c0_i32_1 = arith.constant 0 : i32
    return %c0_i32, %c0_i32_0 : i32, i32
  }
  func.func @transform_1(%arg0: i32, %arg1: i32) -> (i32, i32) {
    %c0_i32 = arith.constant 0 : i32
    %c0_i32_0 = arith.constant 0 : i32
    %c0_i32_1 = arith.constant 0 : i32
    return %c0_i32, %c0_i32_0 : i32, i32
  }
  func.func @transform_2(%arg0: i32, %arg1: i32) -> (i32, i32) {
    %c0_i32 = arith.constant 0 : i32
    %c0_i32_0 = arith.constant 0 : i32
    %c0_i32_1 = arith.constant 0 : i32
    return %c0_i32, %c0_i32_0 : i32, i32
  }
  func.func @transform_3(%arg0: i32, %arg1: i32) -> (i32, i32) {
    %c0_i32 = arith.constant 0 : i32
    %c0_i32_0 = arith.constant 0 : i32
    %c0_i32_1 = arith.constant 0 : i32
    return %c0_i32, %c0_i32_0 : i32, i32
  }
  func.func @transform_4(%arg0: i32, %arg1: i32) -> (i32, i32) {
    %c0_i32 = arith.constant 0 : i32
    %c0_i32_0 = arith.constant 0 : i32
    %c0_i32_1 = arith.constant 0 : i32
    return %c0_i32, %c0_i32_0 : i32, i32
  }
  func.func @transform_5(%arg0: i32, %arg1: i32) -> (i32, i32) {
    %c0_i32 = arith.constant 0 : i32
    %c0_i32_0 = arith.constant 0 : i32
    %c0_i32_1 = arith.constant 0 : i32
    return %c0_i32, %c0_i32_0 : i32, i32
  }
  func.func @transform_6(%arg0: i32, %arg1: i32) -> (i32, i32) {
    %c0_i32 = arith.constant 0 : i32
    %c0_i32_0 = arith.constant 0 : i32
    %c0_i32_1 = arith.constant 0 : i32
    return %c0_i32, %c0_i32_0 : i32, i32
  }
  func.func @transform_7(%arg0: i32, %arg1: i32) -> (i32, i32) {
    %c0_i32 = arith.constant 0 : i32
    %c0_i32_0 = arith.constant 0 : i32
    %c0_i32_1 = arith.constant 0 : i32
    return %c0_i32, %c0_i32_0 : i32, i32
  }
  func.func @transform_8(%arg0: i32, %arg1: i32) -> (i32, i32) {
    %c0_i32 = arith.constant 0 : i32
    %c0_i32_0 = arith.constant 0 : i32
    %c0_i32_1 = arith.constant 0 : i32
    return %c0_i32, %c0_i32_0 : i32, i32
  }
  func.func @transform_9(%arg0: i32, %arg1: i32) -> (i32, i32) {
    %c0_i32 = arith.constant 0 : i32
    %c0_i32_0 = arith.constant 0 : i32
    %c0_i32_1 = arith.constant 0 : i32
    return %c0_i32, %c0_i32_0 : i32, i32
  }
  func.func @transform_10(%arg0: i32, %arg1: i32) -> (i32, i32) {
    %c0_i32 = arith.constant 0 : i32
    %c0_i32_0 = arith.constant 0 : i32
    %c0_i32_1 = arith.constant 0 : i32
    return %c0_i32, %c0_i32_0 : i32, i32
  }
  func.func @transform_11(%arg0: i32, %arg1: i32) -> (i32, i32) {
    %c0_i32 = arith.constant 0 : i32
    %c0_i32_0 = arith.constant 0 : i32
    %c0_i32_1 = arith.constant 0 : i32
    return %c0_i32, %c0_i32_0 : i32, i32
  }
  func.func @transform_12(%arg0: i32, %arg1: i32) -> (i32, i32) {
    %c0_i32 = arith.constant 0 : i32
    %c0_i32_0 = arith.constant 0 : i32
    %c0_i32_1 = arith.constant 0 : i32
    return %c0_i32, %c0_i32_0 : i32, i32
  }
  func.func @transform_13(%arg0: i32, %arg1: i32) -> (i32, i32) {
    %c0_i32 = arith.constant 0 : i32
    %c0_i32_0 = arith.constant 0 : i32
    %c0_i32_1 = arith.constant 0 : i32
    return %c0_i32, %c0_i32_0 : i32, i32
  }
  func.func @transform_14(%arg0: i32, %arg1: i32) -> (i32, i32, i32) {
    %c2_i32 = arith.constant 2 : i32
    %0 = arith.muli %arg0, %c2_i32 : i32
    %1 = arith.addi %0, %arg1 : i32
    %c0_i32 = arith.constant 0 : i32
    %c0_i32_0 = arith.constant 0 : i32
    %c0_i32_1 = arith.constant 0 : i32
    return %1, %c0_i32, %c0_i32_0 : i32, i32, i32
  }
}

</mosaic_0001>

<llo_original>
// kernel: gnn_forward_pallas.1
$region0: #{gnn_forward_pallas.1}
  #allocation0 [shape = 'u32[]', space=smem, size = 0x4, offset = 0x4, fixed_abs, tag = 'smem constant byte address 0x4 - core index']
  #allocation1 [shape = 'u32[144,128]{1,0:T(1,128)}', space=vmem, size = 0x12000, scoped, tag = 'internal scratch']
  #allocation2 [shape = 'f32[2,32,8]{2,1,0:T(8,128)}', space=vmem, size = 0x8000, scoped, tag = 'scratch operand']
  #allocation3 [shape = 'f32[32,16]{1,0:T(8,128)}', space=vmem, size = 0x4000, scoped, tag = 'scratch operand']
  #allocation4 [shape = 'f32[1,1]{1,0:T(1,128)S(1)}', space=vmem, size = 0x200, scoped, tag = 'scoped memory for gnn_forward_pallas.1']
  %s0 = inlined_call_operand.vmem [shape: f32[16,16], index: 0, kind: input, shape index: {}]
  %s1 = inlined_call_operand.vmem [shape: f32[32,16], index: 1, kind: input, shape index: {}]
  %s2 = inlined_call_operand.vmem [shape: f32[32,16], index: 2, kind: input, shape index: {}]
  %s3 = inlined_call_operand.vmem [shape: f32[32,1], index: 3, kind: input, shape index: {}]
  %s4 = inlined_call_operand.vmem [shape: f32[32,32], index: 4, kind: input, shape index: {}]
  %s5 = inlined_call_operand.vmem [shape: f32[32,32], index: 5, kind: input, shape index: {}]
  %s6 = inlined_call_operand.vmem [shape: f32[32,1], index: 6, kind: input, shape index: {}]
  %s7 = inlined_call_operand.vmem [shape: f32[32,32], index: 7, kind: input, shape index: {}]
  %s8 = inlined_call_operand.vmem [shape: f32[32,32], index: 8, kind: input, shape index: {}]
  %s9 = inlined_call_operand.vmem [shape: f32[32,1], index: 9, kind: input, shape index: {}]
  %s10 = inlined_call_operand.vmem [shape: f32[32,32], index: 10, kind: input, shape index: {}]
  %s11 = inlined_call_operand.vmem [shape: f32[32,1], index: 11, kind: input, shape index: {}]
  %s12 = inlined_call_operand.vmem [shape: f32[32,1], index: 12, kind: input, shape index: {}]
  %s13 = inlined_call_operand.<no memory space> [shape: f32[1,1], index: 13, kind: input, shape index: {}]
  %s14 = inlined_call_operand.vmem [shape: f32[2,1,128], index: 14, kind: output, shape index: {}]
  %s15 = sld [smem:[#allocation0]]
  $region93: #{gnn_forward_pallas.1} parent=0
    _
  %s17 = ssub.s32 1, %s15
  %s18 = scalar_select 0, %s17, %s15
  %v19 = vstv %s13
  %20 = vst [vmem:[#allocation4] sm:$0x1] %v19
  loop: start=0, step=1, limit=4
  $region2: #{gnn_forward_pallas.1} parent=0 // loop_pre_header
    _
  $region3: #{gnn_forward_pallas.1} parent=0 // loop_header
    %s22 = sphi 0, %s26
    %p23 = scmp.ge.s32.totalorder %s22, 4
    %s29 = sphi 0, %s41
    %s30 = sphi 0, %s37
    %s31 = sphi 0, %s29
    %s32 = sphi 0, %s30
    %s33 = sphi 0, %s31
    %s34 = sphi 0, %s32
    %s42 = sphi 0, %s42
    %s44 = sphi 0, %s42
    %s45 = sphi 0, %s44
    %s59 = sphi 0, %s45
    %s63 = sphi 0, %s63
    %s65 = sphi 0, %s63
    %s66 = sphi 0, %s65
    %s80 = sphi 0, %s66
    %s84 = sphi 0, %s84
    %s86 = sphi 0, %s84
    %s87 = sphi 0, %s86
    %s101 = sphi 0, %s87
    %s105 = sphi 0, %s105
    %s107 = sphi 0, %s105
    %s108 = sphi 0, %s107
    %s122 = sphi 0, %s108
    %s126 = sphi 0, %s126
    %s128 = sphi 0, %s126
    %s129 = sphi 0, %s128
    %s143 = sphi 0, %s129
    %s147 = sphi 0, %s147
    %s149 = sphi 0, %s147
    %s150 = sphi 0, %s149
    %s164 = sphi 0, %s150
    %s168 = sphi 0, %s168
    %s170 = sphi 0, %s168
    %s171 = sphi 0, %s170
    %s185 = sphi 0, %s171
    %s189 = sphi 0, %s189
    %s191 = sphi 0, %s189
    %s192 = sphi 0, %s191
    %s206 = sphi 0, %s192
    %s210 = sphi 0, %s210
    %s212 = sphi 0, %s210
    %s213 = sphi 0, %s212
    %s227 = sphi 0, %s213
    %s231 = sphi 0, %s231
    %s233 = sphi 0, %s231
    %s234 = sphi 0, %s233
    %s248 = sphi 0, %s234
    %s252 = sphi 0, %s252
    %s254 = sphi 0, %s252
    %s255 = sphi 0, %s254
    %s269 = sphi 0, %s255
    %s273 = sphi 0, %s273
    %s275 = sphi 0, %s273
    %s276 = sphi 0, %s275
    %s290 = sphi 0, %s276
    %s294 = sphi 0, %s294
    %s296 = sphi 0, %s294
    %s297 = sphi 0, %s296
    %s311 = sphi 0, %s297
    %s315 = sphi 0, %s315
    %s317 = sphi 0, %s315
    %s318 = sphi 0, %s317
    %s332 = sphi 0, %s318
    %s342 = sphi 0, %s344
    %s345 = sphi 0, %s342
    %s346 = sphi 0, %s345
    %s362 = sphi 0, %s346
  $region4: #{gnn_forward_pallas.1} parent=0 // loop_header_branch
    %25 = sbr.rel (%p23) target = $region8
  $region5: #{gnn_forward_pallas.1} parent=0 // loop_body
    %s27 = ssub.s32 %s22, 1
    %s28 = ssub.s32 %s22, 2
    %s35 = sadd.s32 1, %s30
    %p36 = scmp.ge.s32.totalorder %s35, 2
    %s37 = scalar_select %p36, 0, %s35
    %s38 = sadd.s32 1, %s29
    %s39 = scalar_select %p36, %s38, %s29
    %p40 = scmp.ge.s32.totalorder %s39, 1
    %s41 = scalar_select %p40, 0, %s39
    %s43 = sadd.s32 %s42, 1
    %p46 = scmp.eq.s32.totalorder %s22, 1
    %p47 = scmp.ne.s32.totalorder %s42, %s44
    %p48 = scmp.eq.s32.totalorder %s22, 0
    %p49 = por %p47, %p48
    %p50 = scmp.ne.s32.totalorder %s42, %s44
    %p51 = scmp.eq.s32.totalorder %s27, 1
    %p52 = por %p50, %p51
    %p53 = scmp.ne.s32.totalorder %s44, %s45
    %p54 = scmp.eq.s32.totalorder %s27, 0
    %p55 = por %p53, %p54
    %p56 = scmp.ne.s32.totalorder %s44, %s45
    %p57 = scmp.eq.s32.totalorder %s28, 1
    %p58 = por %p56, %p57
    %p60 = scmp.ne.s32.totalorder %s45, %s59
    %p61 = scmp.eq.s32.totalorder %s28, 0
    %p62 = por %p60, %p61
    %s64 = sadd.s32 %s63, 1
    %p67 = scmp.eq.s32.totalorder %s22, 1
    %p68 = scmp.ne.s32.totalorder %s63, %s65
    %p69 = scmp.eq.s32.totalorder %s22, 0
    %p70 = por %p68, %p69
    %p71 = scmp.ne.s32.totalorder %s63, %s65
    %p72 = scmp.eq.s32.totalorder %s27, 1
    %p73 = por %p71, %p72
    %p74 = scmp.ne.s32.totalorder %s65, %s66
    %p75 = scmp.eq.s32.totalorder %s27, 0
    %p76 = por %p74, %p75
    %p77 = scmp.ne.s32.totalorder %s65, %s66
    %p78 = scmp.eq.s32.totalorder %s28, 1
    %p79 = por %p77, %p78
    %p81 = scmp.ne.s32.totalorder %s66, %s80
    %p82 = scmp.eq.s32.totalorder %s28, 0
    %p83 = por %p81, %p82
    %s85 = sadd.s32 %s84, 1
    %p88 = scmp.eq.s32.totalorder %s22, 1
    %p89 = scmp.ne.s32.totalorder %s84, %s86
    %p90 = scmp.eq.s32.totalorder %s22, 0
    %p91 = por %p89, %p90
    %p92 = scmp.ne.s32.totalorder %s84, %s86
    %p93 = scmp.eq.s32.totalorder %s27, 1
    %p94 = por %p92, %p93
    %p95 = scmp.ne.s32.totalorder %s86, %s87
    %p96 = scmp.eq.s32.totalorder %s27, 0
    %p97 = por %p95, %p96
    %p98 = scmp.ne.s32.totalorder %s86, %s87
    %p99 = scmp.eq.s32.totalorder %s28, 1
    %p100 = por %p98, %p99
    %p102 = scmp.ne.s32.totalorder %s87, %s101
    %p103 = scmp.eq.s32.totalorder %s28, 0
    %p104 = por %p102, %p103
    %s106 = sadd.s32 %s105, 1
    %p109 = scmp.eq.s32.totalorder %s22, 1
    %p110 = scmp.ne.s32.totalorder %s105, %s107
    %p111 = scmp.eq.s32.totalorder %s22, 0
    %p112 = por %p110, %p111
    %p113 = scmp.ne.s32.totalorder %s105, %s107
    %p114 = scmp.eq.s32.totalorder %s27, 1
    %p115 = por %p113, %p114
    %p116 = scmp.ne.s32.totalorder %s107, %s108
    %p117 = scmp.eq.s32.totalorder %s27, 0
    %p118 = por %p116, %p117
    %p119 = scmp.ne.s32.totalorder %s107, %s108
    %p120 = scmp.eq.s32.totalorder %s28, 1
    %p121 = por %p119, %p120
    %p123 = scmp.ne.s32.totalorder %s108, %s122
    %p124 = scmp.eq.s32.totalorder %s28, 0
    %p125 = por %p123, %p124
    %s127 = sadd.s32 %s126, 1
    %p130 = scmp.eq.s32.totalorder %s22, 1
    %p131 = scmp.ne.s32.totalorder %s126, %s128
    %p132 = scmp.eq.s32.totalorder %s22, 0
    %p133 = por %p131, %p132
    %p134 = scmp.ne.s32.totalorder %s126, %s128
    %p135 = scmp.eq.s32.totalorder %s27, 1
    %p136 = por %p134, %p135
    %p137 = scmp.ne.s32.totalorder %s128, %s129
    %p138 = scmp.eq.s32.totalorder %s27, 0
    %p139 = por %p137, %p138
    %p140 = scmp.ne.s32.totalorder %s128, %s129
    %p141 = scmp.eq.s32.totalorder %s28, 1
    %p142 = por %p140, %p141
    %p144 = scmp.ne.s32.totalorder %s129, %s143
    %p145 = scmp.eq.s32.totalorder %s28, 0
    %p146 = por %p144, %p145
    %s148 = sadd.s32 %s147, 1
    %p151 = scmp.eq.s32.totalorder %s22, 1
    %p152 = scmp.ne.s32.totalorder %s147, %s149
    %p153 = scmp.eq.s32.totalorder %s22, 0
    %p154 = por %p152, %p153
    %p155 = scmp.ne.s32.totalorder %s147, %s149
    %p156 = scmp.eq.s32.totalorder %s27, 1
    %p157 = por %p155, %p156
    %p158 = scmp.ne.s32.totalorder %s149, %s150
    %p159 = scmp.eq.s32.totalorder %s27, 0
    %p160 = por %p158, %p159
    %p161 = scmp.ne.s32.totalorder %s149, %s150
    %p162 = scmp.eq.s32.totalorder %s28, 1
    %p163 = por %p161, %p162
    %p165 = scmp.ne.s32.totalorder %s150, %s164
    %p166 = scmp.eq.s32.totalorder %s28, 0
    %p167 = por %p165, %p166
    %s169 = sadd.s32 %s168, 1
    %p172 = scmp.eq.s32.totalorder %s22, 1
    %p173 = scmp.ne.s32.totalorder %s168, %s170
    %p174 = scmp.eq.s32.totalorder %s22, 0
    %p175 = por %p173, %p174
    %p176 = scmp.ne.s32.totalorder %s168, %s170
    %p177 = scmp.eq.s32.totalorder %s27, 1
    %p178 = por %p176, %p177
    %p179 = scmp.ne.s32.totalorder %s170, %s171
    %p180 = scmp.eq.s32.totalorder %s27, 0
    %p181 = por %p179, %p180
    %p182 = scmp.ne.s32.totalorder %s170, %s171
    %p183 = scmp.eq.s32.totalorder %s28, 1
    %p184 = por %p182, %p183
    %p186 = scmp.ne.s32.totalorder %s171, %s185
    %p187 = scmp.eq.s32.totalorder %s28, 0
    %p188 = por %p186, %p187
    %s190 = sadd.s32 %s189, 1
    %p193 = scmp.eq.s32.totalorder %s22, 1
    %p194 = scmp.ne.s32.totalorder %s189, %s191
    %p195 = scmp.eq.s32.totalorder %s22, 0
    %p196 = por %p194, %p195
    %p197 = scmp.ne.s32.totalorder %s189, %s191
    %p198 = scmp.eq.s32.totalorder %s27, 1
    %p199 = por %p197, %p198
    %p200 = scmp.ne.s32.totalorder %s191, %s192
    %p201 = scmp.eq.s32.totalorder %s27, 0
    %p202 = por %p200, %p201
    %p203 = scmp.ne.s32.totalorder %s191, %s192
    %p204 = scmp.eq.s32.totalorder %s28, 1
    %p205 = por %p203, %p204
    %p207 = scmp.ne.s32.totalorder %s192, %s206
    %p208 = scmp.eq.s32.totalorder %s28, 0
    %p209 = por %p207, %p208
    %s211 = sadd.s32 %s210, 1
    %p214 = scmp.eq.s32.totalorder %s22, 1
    %p215 = scmp.ne.s32.totalorder %s210, %s212
    %p216 = scmp.eq.s32.totalorder %s22, 0
    %p217 = por %p215, %p216
    %p218 = scmp.ne.s32.totalorder %s210, %s212
    %p219 = scmp.eq.s32.totalorder %s27, 1
    %p220 = por %p218, %p219
    %p221 = scmp.ne.s32.totalorder %s212, %s213
    %p222 = scmp.eq.s32.totalorder %s27, 0
    %p223 = por %p221, %p222
    %p224 = scmp.ne.s32.totalorder %s212, %s213
    %p225 = scmp.eq.s32.totalorder %s28, 1
    %p226 = por %p224, %p225
    %p228 = scmp.ne.s32.totalorder %s213, %s227
    %p229 = scmp.eq.s32.totalorder %s28, 0
    %p230 = por %p228, %p229
    %s232 = sadd.s32 %s231, 1
    %p235 = scmp.eq.s32.totalorder %s22, 1
    %p236 = scmp.ne.s32.totalorder %s231, %s233
    %p237 = scmp.eq.s32.totalorder %s22, 0
    %p238 = por %p236, %p237
    %p239 = scmp.ne.s32.totalorder %s231, %s233
    %p240 = scmp.eq.s32.totalorder %s27, 1
    %p241 = por %p239, %p240
    %p242 = scmp.ne.s32.totalorder %s233, %s234
    %p243 = scmp.eq.s32.totalorder %s27, 0
    %p244 = por %p242, %p243
    %p245 = scmp.ne.s32.totalorder %s233, %s234
    %p246 = scmp.eq.s32.totalorder %s28, 1
    %p247 = por %p245, %p246
    %p249 = scmp.ne.s32.totalorder %s234, %s248
    %p250 = scmp.eq.s32.totalorder %s28, 0
    %p251 = por %p249, %p250
    %s253 = sadd.s32 %s252, 1
    %p256 = scmp.eq.s32.totalorder %s22, 1
    %p257 = scmp.ne.s32.totalorder %s252, %s254
    %p258 = scmp.eq.s32.totalorder %s22, 0
    %p259 = por %p257, %p258
    %p260 = scmp.ne.s32.totalorder %s252, %s254
    %p261 = scmp.eq.s32.totalorder %s27, 1
    %p262 = por %p260, %p261
    %p263 = scmp.ne.s32.totalorder %s254, %s255
    %p264 = scmp.eq.s32.totalorder %s27, 0
    %p265 = por %p263, %p264
    %p266 = scmp.ne.s32.totalorder %s254, %s255
    %p267 = scmp.eq.s32.totalorder %s28, 1
    %p268 = por %p266, %p267
    %p270 = scmp.ne.s32.totalorder %s255, %s269
    %p271 = scmp.eq.s32.totalorder %s28, 0
    %p272 = por %p270, %p271
    %s274 = sadd.s32 %s273, 1
    %p277 = scmp.eq.s32.totalorder %s22, 1
    %p278 = scmp.ne.s32.totalorder %s273, %s275
    %p279 = scmp.eq.s32.totalorder %s22, 0
    %p280 = por %p278, %p279
    %p281 = scmp.ne.s32.totalorder %s273, %s275
    %p282 = scmp.eq.s32.totalorder %s27, 1
    %p283 = por %p281, %p282
    %p284 = scmp.ne.s32.totalorder %s275, %s276
    %p285 = scmp.eq.s32.totalorder %s27, 0
    %p286 = por %p284, %p285
    %p287 = scmp.ne.s32.totalorder %s275, %s276
    %p288 = scmp.eq.s32.totalorder %s28, 1
    %p289 = por %p287, %p288
    %p291 = scmp.ne.s32.totalorder %s276, %s290
    %p292 = scmp.eq.s32.totalorder %s28, 0
    %p293 = por %p291, %p292
    %s295 = sadd.s32 %s294, 1
    %p298 = scmp.eq.s32.totalorder %s22, 1
    %p299 = scmp.ne.s32.totalorder %s294, %s296
    %p300 = scmp.eq.s32.totalorder %s22, 0
    %p301 = por %p299, %p300
    %p302 = scmp.ne.s32.totalorder %s294, %s296
    %p303 = scmp.eq.s32.totalorder %s27, 1
    %p304 = por %p302, %p303
    %p305 = scmp.ne.s32.totalorder %s296, %s297
    %p306 = scmp.eq.s32.totalorder %s27, 0
    %p307 = por %p305, %p306
    %p308 = scmp.ne.s32.totalorder %s296, %s297
    %p309 = scmp.eq.s32.totalorder %s28, 1
    %p310 = por %p308, %p309
    %p312 = scmp.ne.s32.totalorder %s297, %s311
    %p313 = scmp.eq.s32.totalorder %s28, 0
    %p314 = por %p312, %p313
    %s316 = sadd.s32 %s315, 1
    %p319 = scmp.eq.s32.totalorder %s22, 1
    %p320 = scmp.ne.s32.totalorder %s315, %s317
    %p321 = scmp.eq.s32.totalorder %s22, 0
    %p322 = por %p320, %p321
    %p323 = scmp.ne.s32.totalorder %s315, %s317
    %p324 = scmp.eq.s32.totalorder %s27, 1
    %p325 = por %p323, %p324
    %p326 = scmp.ne.s32.totalorder %s317, %s318
    %p327 = scmp.eq.s32.totalorder %s27, 0
    %p328 = por %p326, %p327
    %p329 = scmp.ne.s32.totalorder %s317, %s318
    %p330 = scmp.eq.s32.totalorder %s28, 1
    %p331 = por %p329, %p330
    %p333 = scmp.ne.s32.totalorder %s318, %s332
    %p334 = scmp.eq.s32.totalorder %s28, 0
    %p335 = por %p333, %p334
    %s336 = smul.u32 %s29, 2
    %s337 = sadd.s32 %s336, %s30
    %s338 = smul.u32 %s41, 2
    %s339 = sadd.s32 %s338, %s37
    %s340 = ssub.s32 %s337, %s339
    %p341 = scmp.eq.s32.totalorder %s340, 0
    %s343 = sadd.s32 %s342, 1
    %s344 = scalar_select %p341, %s342, %s343
    %p347 = pneg %p341
    %p348 = scmp.eq.s32.totalorder %s22, 1
    %p349 = por %p347, %p348
    %p350 = scmp.ne.s32.totalorder %s342, %s345
    %p351 = scmp.eq.s32.totalorder %s22, 0
    %p352 = por %p350, %p351
    %p353 = scmp.ne.s32.totalorder %s342, %s345
    %p354 = scmp.eq.s32.totalorder %s27, 1
    %p355 = por %p353, %p354
    %p356 = scmp.ne.s32.totalorder %s345, %s346
    %p357 = scmp.eq.s32.totalorder %s27, 0
    %p358 = por %p356, %p357
    %p359 = scmp.ne.s32.totalorder %s345, %s346
    %p360 = scmp.eq.s32.totalorder %s28, 1
    %p361 = por %p359, %p360
    %p363 = scmp.ne.s32.totalorder %s346, %s362
    %p364 = scmp.eq.s32.totalorder %s28, 0
    %p365 = por %p363, %p364
    %p366 = scmp.le.s32.totalorder 1, %s22
    %p367 = scmp.lt.s32.totalorder %s22, 3
    %p368 = pnand %p366, %p367
    %p369 = pneg %p368
    // Predicated region
    $region9: #{gnn_forward_pallas.1} parent=5 // pred_check
      _
    $region10: #{gnn_forward_pallas.1} parent=5 // pred_check_branch
      %371 = sbr.rel (%p368) target = $region12
    $region11: #{gnn_forward_pallas.1} parent=5 // pred_region
      %s372 = ssub.s32 %s22, 1
      // Predicated region
      $region13: #{gnn_forward_pallas.1} parent=11 // pred_check
        %p373 = pneg %p55
      $region14: #{gnn_forward_pallas.1} parent=11 // pred_check_branch
        %375 = sbr.rel (%p373) target = $region16
      $region15: #{gnn_forward_pallas.1} parent=11 // pred_region
        _
      $region16: #{gnn_forward_pallas.1} parent=11 // pred_fallthru
        _
      // Predicated region
      $region17: #{gnn_forward_pallas.1} parent=11 // pred_check
        %p376 = pneg %p76
      $region18: #{gnn_forward_pallas.1} parent=11 // pred_check_branch
        %378 = sbr.rel (%p376) target = $region20
      $region19: #{gnn_forward_pallas.1} parent=11 // pred_region
        _
      $region20: #{gnn_forward_pallas.1} parent=11 // pred_fallthru
        _
      // Predicated region
      $region21: #{gnn_forward_pallas.1} parent=11 // pred_check
        %p379 = pneg %p97
      $region22: #{gnn_forward_pallas.1} parent=11 // pred_check_branch
        %381 = sbr.rel (%p379) target = $region24
      $region23: #{gnn_forward_pallas.1} parent=11 // pred_region
        _
      $region24: #{gnn_forward_pallas.1} parent=11 // pred_fallthru
        _
      // Predicated region
      $region25: #{gnn_forward_pallas.1} parent=11 // pred_check
        %p382 = pneg %p118
      $region26: #{gnn_forward_pallas.1} parent=11 // pred_check_branch
        %384 = sbr.rel (%p382) target = $region28
      $region27: #{gnn_forward_pallas.1} parent=11 // pred_region
        _
      $region28: #{gnn_forward_pallas.1} parent=11 // pred_fallthru
        _
      // Predicated region
      $region29: #{gnn_forward_pallas.1} parent=11 // pred_check
        %p385 = pneg %p139
      $region30: #{gnn_forward_pallas.1} parent=11 // pred_check_branch
        %387 = sbr.rel (%p385) target = $region32
      $region31: #{gnn_forward_pallas.1} parent=11 // pred_region
        _
      $region32: #{gnn_forward_pallas.1} parent=11 // pred_fallthru
        _
      // Predicated region
      $region33: #{gnn_forward_pallas.1} parent=11 // pred_check
        %p388 = pneg %p160
      $region34: #{gnn_forward_pallas.1} parent=11 // pred_check_branch
        %390 = sbr.rel (%p388) target = $region36
      $region35: #{gnn_forward_pallas.1} parent=11 // pred_region
        _
      $region36: #{gnn_forward_pallas.1} parent=11 // pred_fallthru
        _
      // Predicated region
      $region37: #{gnn_forward_pallas.1} parent=11 // pred_check
        %p391 = pneg %p181
      $region38: #{gnn_forward_pallas.1} parent=11 // pred_check_branch
        %393 = sbr.rel (%p391) target = $region40
      $region39: #{gnn_forward_pallas.1} parent=11 // pred_region
        _
      $region40: #{gnn_forward_pallas.1} parent=11 // pred_fallthru
        _
      // Predicated region
      $region41: #{gnn_forward_pallas.1} parent=11 // pred_check
        %p394 = pneg %p202
      $region42: #{gnn_forward_pallas.1} parent=11 // pred_check_branch
        %396 = sbr.rel (%p394) target = $region44
      $region43: #{gnn_forward_pallas.1} parent=11 // pred_region
        _
      $region44: #{gnn_forward_pallas.1} parent=11 // pred_fallthru
        _
      // Predicated region
      $region45: #{gnn_forward_pallas.1} parent=11 // pred_check
        %p397 = pneg %p223
      $region46: #{gnn_forward_pallas.1} parent=11 // pred_check_branch
        %399 = sbr.rel (%p397) target = $region48
      $region47: #{gnn_forward_pallas.1} parent=11 // pred_region
        _
      $region48: #{gnn_forward_pallas.1} parent=11 // pred_fallthru
        _
      // Predicated region
      $region49: #{gnn_forward_pallas.1} parent=11 // pred_check
        %p400 = pneg %p244
      $region50: #{gnn_forward_pallas.1} parent=11 // pred_check_branch
        %402 = sbr.rel (%p400) target = $region52
      $region51: #{gnn_forward_pallas.1} parent=11 // pred_region
        _
      $region52: #{gnn_forward_pallas.1} parent=11 // pred_fallthru
        _
      // Predicated region
      $region53: #{gnn_forward_pallas.1} parent=11 // pred_check
        %p403 = pneg %p265
      $region54: #{gnn_forward_pallas.1} parent=11 // pred_check_branch
        %405 = sbr.rel (%p403) target = $region56
      $region55: #{gnn_forward_pallas.1} parent=11 // pred_region
        _
      $region56: #{gnn_forward_pallas.1} parent=11 // pred_fallthru
        _
      // Predicated region
      $region57: #{gnn_forward_pallas.1} parent=11 // pred_check
        %p406 = pneg %p286
      $region58: #{gnn_forward_pallas.1} parent=11 // pred_check_branch
        %408 = sbr.rel (%p406) target = $region60
      $region59: #{gnn_forward_pallas.1} parent=11 // pred_region
        _
      $region60: #{gnn_forward_pallas.1} parent=11 // pred_fallthru
        _
      // Predicated region
      $region61: #{gnn_forward_pallas.1} parent=11 // pred_check
        %p409 = pneg %p307
      $region62: #{gnn_forward_pallas.1} parent=11 // pred_check_branch
        %411 = sbr.rel (%p409) target = $region64
      $region63: #{gnn_forward_pallas.1} parent=11 // pred_region
        _
      $region64: #{gnn_forward_pallas.1} parent=11 // pred_fallthru
        _
      // Predicated region
      $region65: #{gnn_forward_pallas.1} parent=11 // pred_check
        %p412 = pneg %p328
      $region66: #{gnn_forward_pallas.1} parent=11 // pred_check_branch
        %414 = sbr.rel (%p412) target = $region68
      $region67: #{gnn_forward_pallas.1} parent=11 // pred_region
        _
      $region68: #{gnn_forward_pallas.1} parent=11 // pred_fallthru
        _
    $region12: #{gnn_forward_pallas.1} parent=5 // pred_fallthru
      _
    %p415 = scmp.lt.s32.totalorder %s22, 2
    // Predicated region
    $region69: #{gnn_forward_pallas.1} parent=5 // pred_check
      %p416 = pneg %p415
    $region70: #{gnn_forward_pallas.1} parent=5 // pred_check_branch
      %418 = sbr.rel (%p416) target = $region72
    $region71: #{gnn_forward_pallas.1} parent=5 // pred_region
      _
    $region72: #{gnn_forward_pallas.1} parent=5 // pred_fallthru
      _
    %p419 = scmp.le.s32.totalorder 1, %s22
    %p420 = scmp.lt.s32.totalorder %s22, 3
    %p421 = pnand %p419, %p420
    %p422 = pneg %p421
    // Predicated region
    $region73: #{gnn_forward_pallas.1} parent=5 // pred_check
      _
    $region74: #{gnn_forward_pallas.1} parent=5 // pred_check_branch
      %424 = sbr.rel (%p421) target = $region76
    $region75: #{gnn_forward_pallas.1} parent=5 // pred_region
      %s425 = ssub.s32 %s22, 1
      %p426 = pneg %p55
      %p427 = pneg %p52
      %p428 = pneg %p76
      %p429 = pneg %p73
      %p430 = pneg %p97
      %p431 = pneg %p94
      %p432 = pneg %p118
      %p433 = pneg %p115
      %p434 = pneg %p139
      %p435 = pneg %p136
      %p436 = pneg %p160
      %p437 = pneg %p157
      %p438 = pneg %p181
      %p439 = pneg %p178
      %p440 = pneg %p202
      %p441 = pneg %p199
      %p442 = pneg %p223
      %p443 = pneg %p220
      %p444 = pneg %p244
      %p445 = pneg %p241
      %p446 = pneg %p265
      %p447 = pneg %p262
      %p448 = pneg %p286
      %p449 = pneg %p283
      %p450 = pneg %p307
      %p451 = pneg %p304
      %p452 = pneg %p328
      %p453 = pneg %p325
      %p454 = pneg %p358
      %p455 = pneg %p355
      %s456 = smul.u32 %s31, 2
      %s457 = sadd.s32 %s456, %s32
      %p458 = scmp.lt.s32.totalorder %s457, 1
      %s459 = scalar_select %p458, %s457, 1
      %s460 = scalar_lea.vmem %s14, %s459
      %s461 = smul.u32 %s31, 2
      %s462 = sadd.s32 %s461, %s32
      %p463 = scmp.lt.s32.totalorder %s462, 1
      %s464 = scalar_select %p463, %s462, 1
      %s465 = scalar_lea.vmem %s14, %s464
      %s466 = smul.u32 %s31, 2
      %s467 = sadd.s32 %s466, %s32
      %p468 = scmp.eq.s32.totalorder %s32, 0
      // Predicated region
      $region77: #{gnn_forward_pallas.1} parent=75 // pred_check
        %p469 = pneg %p468
      $region78: #{gnn_forward_pallas.1} parent=75 // pred_check_branch
        %471 = sbr.rel (%p469) target = $region80
      $region79: #{gnn_forward_pallas.1} parent=75 // pred_region
        %v472 = vld [vmem:[%s0] sm:$0xff]
        %v473 = vld [vmem:[%s0 + $0x8] sm:$0xff]
        %vm474 = vcmask 130048
        %v475 = vsel %vm474, %v472, 0.0
        %476 = vadd.xlane.f32.xlu0 %v475
        %v477 = vpop.xlane.xlu0 %476
        %v478 = vsel %vm474, %v473, 0.0
        %479 = vadd.xlane.f32.xlu0 %v478
        %v480 = vpop.xlane.xlu0 %479
        %v481 = vrcp.pop 16.0
        %v482 = vmul.f32 %v477, %v481
        %v483 = vmul.f32 %v480, %v481
        %v484 = vld [vmem:[%s2] sm:$0xff]
        %v485 = vld [vmem:[%s2 + $0x8] sm:$0xff]
        %v486 = vld [vmem:[%s2 + $0x10] sm:$0xff]
        %v487 = vld [vmem:[%s2 + $0x18] sm:$0xff]
        %v489 = vsel %vm474, %v484, 0
        %v492 = vsel %vm474, %v485, 0
        %v495 = vsel %vm474, %v486, 0
        %v498 = vsel %vm474, %v487, 0
        %500 = vmatprep.subr.mxu0 0.0
        %501 = vmatpush1.msra.mxu0 %v482
        %502 = vmatprep.subr.mxu0 0.0
        %503 = vmatpush1.msra.mxu0 %v483
        %504 = vmatprep.subr.mxu0 0.0
        %505 = vmatpush1.msra.mxu0 0.0
        %506 = vmatprep.subr.mxu0 0.0
        %507 = vmatpush1.msra.mxu0 0.0
        %508 = vmatprep.subr.mxu0 0.0
        %509 = vmatpush1.msra.mxu0 0.0
        %510 = vmatprep.subr.mxu0 0.0
        %511 = vmatpush1.msra.mxu0 0.0
        %512 = vmatprep.subr.mxu0 0.0
        %513 = vmatpush1.msra.mxu0 0.0
        %514 = vmatprep.subr.mxu0 0.0
        %515 = vmatpush1.msra.mxu0 0.0
        %516 = vmatprep.subr.mxu0 0.0
        %517 = vmatpush1.msra.mxu0 0.0
        %518 = vmatprep.subr.mxu0 0.0
        %519 = vmatpush1.msra.mxu0 0.0
        %520 = vmatprep.subr.mxu0 0.0
        %521 = vmatpush1.msra.mxu0 0.0
        %522 = vmatprep.subr.mxu0 0.0
        %523 = vmatpush1.msra.mxu0 0.0
        %524 = vmatprep.subr.mxu0 0.0
        %525 = vmatpush1.msra.mxu0 0.0
        %526 = vmatprep.subr.mxu0 0.0
        %527 = vmatpush1.msra.mxu0 0.0
        %528 = vmatprep.subr.mxu0 0.0
        %529 = vmatpush1.msra.mxu0 0.0
        %530 = vmatprep.subr.mxu0 0.0
        %531 = vmatpush1.msra.mxu0 0.0
        %532 = vmatprep.subr.mxu0 0.0
        %533 = vmatpush1.msra.mxu0 0.0
        %534 = vmatprep.subr.mxu0 0.0
        %535 = vmatpush1.msra.mxu0 0.0
        %536 = vmatprep.subr.mxu0 0.0
        %537 = vmatpush1.msra.mxu0 0.0
        %538 = vmatprep.subr.mxu0 0.0
        %539 = vmatpush1.msra.mxu0 0.0
        %540 = vmatprep.subr.mxu0 0.0
        %541 = vmatpush1.msra.mxu0 0.0
        %542 = vmatprep.subr.mxu0 0.0
        %543 = vmatpush1.msra.mxu0 0.0
        %544 = vmatprep.subr.mxu0 0.0
        %545 = vmatpush1.msra.mxu0 0.0
        %546 = vmatprep.subr.mxu0 0.0
        %547 = vmatpush1.msra.mxu0 0.0
        %548 = vmatprep.subr.mxu0 0.0
        %549 = vmatpush1.msra.mxu0 0.0
        %550 = vmatprep.subr.mxu0 0.0
        %551 = vmatpush1.msra.mxu0 0.0
        %552 = vmatprep.subr.mxu0 0.0
        %553 = vmatpush1.msra.mxu0 0.0
        %554 = vmatprep.subr.mxu0 0.0
        %555 = vmatpush1.msra.mxu0 0.0
        %556 = vmatprep.subr.mxu0 0.0
        %557 = vmatpush1.msra.mxu0 0.0
        %558 = vmatprep.subr.mxu0 0.0
        %559 = vmatpush1.msra.mxu0 0.0
        %560 = vmatprep.subr.mxu0 0.0
        %561 = vmatpush1.msra.mxu0 0.0
        %562 = vmatprep.subr.mxu0 0.0
        %563 = vmatpush1.msra.mxu0 0.0
        %564 = vmatprep.mubr.f32.mxu0 0.0
        %565 = vmatmul.mubr.f32.gmra.mrb[0].mxu0 %v489
        %v566 = vpop.f32.mrb[0].mxu0
        %v567 = vadd.f32 0.0, %v566
        %v568 = vpop.f32.mrb[0].mxu0
        %569 = vmatprep.mubr.f32.mxu0 0.0
        %570 = vmatmul.mubr.f32.gmra.mrb[0].mxu0 %v492
        %v571 = vpop.f32.mrb[0].mxu0
        %v572 = vadd.f32 0.0, %v571
        %v573 = vpop.f32.mrb[0].mxu0
        %574 = vmatprep.mubr.f32.mxu0 0.0
        %575 = vmatmul.mubr.f32.gmra.mrb[0].mxu0 %v495
        %v576 = vpop.f32.mrb[0].mxu0
        %v577 = vadd.f32 0.0, %v576
        %v578 = vpop.f32.mrb[0].mxu0
        %579 = vmatprep.mubr.f32.mxu0 0.0
        %580 = vmatmul.mubr.f32.gmra.mrb[0].mxu0 %v498
        %v581 = vpop.f32.mrb[0].mxu0
        %v582 = vadd.f32 0.0, %v581
        %v583 = vpop.f32.mrb[0].mxu0
        %584 = vdwg.mxu0
        %v585 = vld [vmem:[%s1] sm:$0xff]
        %v586 = vld [vmem:[%s1 + $0x8] sm:$0xff]
        %v587 = vld [vmem:[%s1 + $0x10] sm:$0xff]
        %v588 = vld [vmem:[%s1 + $0x18] sm:$0xff]
        %590 = vset.pattern.permute.xlu0 0
        %591 = vperm.xlu0 %590, %v567
        %v592 = vpop.permute.xlu0 %591
        %595 = vset.pattern.permute.xlu0 0
        %596 = vperm.xlu0 %595, %v572
        %v597 = vpop.permute.xlu0 %596
        %600 = vset.pattern.permute.xlu0 0
        %601 = vperm.xlu0 %600, %v577
        %v602 = vpop.permute.xlu0 %601
        %605 = vset.pattern.permute.xlu0 0
        %606 = vperm.xlu0 %605, %v582
        %v607 = vpop.permute.xlu0 %606
        %v610 = vsel %vm474, %v585, 0
        %v613 = vsel %vm474, %v586, 0
        %v616 = vsel %vm474, %v587, 0
        %v619 = vsel %vm474, %v588, 0
        %621 = vmatprep.subr.mxu0 0.0
        %622 = vmatpush1.msra.mxu0 %v472
        %623 = vmatprep.subr.mxu0 0.0
        %624 = vmatpush1.msra.mxu0 %v473
        %625 = vmatprep.subr.mxu0 0.0
        %626 = vmatpush1.msra.mxu0 0.0
        %627 = vmatprep.subr.mxu0 0.0
        %628 = vmatpush1.msra.mxu0 0.0
        %629 = vmatprep.subr.mxu0 0.0
        %630 = vmatpush1.msra.mxu0 0.0
        %631 = vmatprep.subr.mxu0 0.0
        %632 = vmatpush1.msra.mxu0 0.0
        %633 = vmatprep.subr.mxu0 0.0
        %634 = vmatpush1.msra.mxu0 0.0
        %635 = vmatprep.subr.mxu0 0.0
        %636 = vmatpush1.msra.mxu0 0.0
        %637 = vmatprep.subr.mxu0 0.0
        %638 = vmatpush1.msra.mxu0 0.0
        %639 = vmatprep.subr.mxu0 0.0
        %640 = vmatpush1.msra.mxu0 0.0
        %641 = vmatprep.subr.mxu0 0.0
        %642 = vmatpush1.msra.mxu0 0.0
        %643 = vmatprep.subr.mxu0 0.0
        %644 = vmatpush1.msra.mxu0 0.0
        %645 = vmatprep.subr.mxu0 0.0
        %646 = vmatpush1.msra.mxu0 0.0
        %647 = vmatprep.subr.mxu0 0.0
        %648 = vmatpush1.msra.mxu0 0.0
        %649 = vmatprep.subr.mxu0 0.0
        %650 = vmatpush1.msra.mxu0 0.0
        %651 = vmatprep.subr.mxu0 0.0
        %652 = vmatpush1.msra.mxu0 0.0
        %653 = vmatprep.subr.mxu0 0.0
        %654 = vmatpush1.msra.mxu0 0.0
        %655 = vmatprep.subr.mxu0 0.0
        %656 = vmatpush1.msra.mxu0 0.0
        %657 = vmatprep.subr.mxu0 0.0
        %658 = vmatpush1.msra.mxu0 0.0
        %659 = vmatprep.subr.mxu0 0.0
        %660 = vmatpush1.msra.mxu0 0.0
        %661 = vmatprep.subr.mxu0 0.0
        %662 = vmatpush1.msra.mxu0 0.0
        %663 = vmatprep.subr.mxu0 0.0
        %664 = vmatpush1.msra.mxu0 0.0
        %665 = vmatprep.subr.mxu0 0.0
        %666 = vmatpush1.msra.mxu0 0.0
        %667 = vmatprep.subr.mxu0 0.0
        %668 = vmatpush1.msra.mxu0 0.0
        %669 = vmatprep.subr.mxu0 0.0
        %670 = vmatpush1.msra.mxu0 0.0
        %671 = vmatprep.subr.mxu0 0.0
        %672 = vmatpush1.msra.mxu0 0.0
        %673 = vmatprep.subr.mxu0 0.0
        %674 = vmatpush1.msra.mxu0 0.0
        %675 = vmatprep.subr.mxu0 0.0
        %676 = vmatpush1.msra.mxu0 0.0
        %677 = vmatprep.subr.mxu0 0.0
        %678 = vmatpush1.msra.mxu0 0.0
        %679 = vmatprep.subr.mxu0 0.0
        %680 = vmatpush1.msra.mxu0 0.0
        %681 = vmatprep.subr.mxu0 0.0
        %682 = vmatpush1.msra.mxu0 0.0
        %683 = vmatprep.subr.mxu0 0.0
        %684 = vmatpush1.msra.mxu0 0.0
        %685 = vmatprep.mubr.f32.mxu0 0.0
        %686 = vmatmul.mubr.f32.gmra.mrb[0].mxu0 %v610
        %v687 = vpop.f32.mrb[0].mxu0
        %v688 = vadd.f32 %v592, %v687
        %v689 = vpop.f32.mrb[0].mxu0
        %690 = vmatprep.mubr.f32.mxu0 0.0
        %691 = vmatmul.mubr.f32.gmra.mrb[0].mxu0 %v613
        %v692 = vpop.f32.mrb[0].mxu0
        %v693 = vadd.f32 %v597, %v692
        %v694 = vpop.f32.mrb[0].mxu0
        %695 = vmatprep.mubr.f32.mxu0 0.0
        %696 = vmatmul.mubr.f32.gmra.mrb[0].mxu0 %v616
        %v697 = vpop.f32.mrb[0].mxu0
        %v698 = vadd.f32 %v602, %v697
        %v699 = vpop.f32.mrb[0].mxu0
        %700 = vmatprep.mubr.f32.mxu0 0.0
        %701 = vmatmul.mubr.f32.gmra.mrb[0].mxu0 %v619
        %v702 = vpop.f32.mrb[0].mxu0
        %v703 = vadd.f32 %v607, %v702
        %v704 = vpop.f32.mrb[0].mxu0
        %705 = vdwg.mxu0
        %v706 = vld [vmem:[%s3] sm:$0xff]
        %v707 = vld [vmem:[%s3 + $0x8] sm:$0xff]
        %v708 = vld [vmem:[%s3 + $0x10] sm:$0xff]
        %v709 = vld [vmem:[%s3 + $0x18] sm:$0xff]
        %711 = vset.pattern.permute.xlu0 0
        %712 = vperm.xlu0 %711, %v706
        %v713 = vpop.permute.xlu0 %712
        %716 = vset.pattern.permute.xlu0 0
        %717 = vperm.xlu0 %716, %v707
        %v718 = vpop.permute.xlu0 %717
        %721 = vset.pattern.permute.xlu0 0
        %722 = vperm.xlu0 %721, %v708
        %v723 = vpop.permute.xlu0 %722
        %726 = vset.pattern.permute.xlu0 0
        %727 = vperm.xlu0 %726, %v709
        %v728 = vpop.permute.xlu0 %727
        %v730 = vadd.f32 %v688, %v713
        %v731 = vadd.f32 %v693, %v718
        %v732 = vadd.f32 %v698, %v723
        %v733 = vadd.f32 %v703, %v728
        %v734 = vmax.f32 %v730, 0.0
        %v735 = vmax.f32 %v731, 0.0
        %v736 = vmax.f32 %v732, 0.0
        %v737 = vmax.f32 %v733, 0.0
        %v738 = vsel %vm474, %v734, 0.0
        %739 = vadd.xlane.f32.xlu0 %v738
        %v740 = vpop.xlane.xlu0 %739
        %v741 = vsel %vm474, %v735, 0.0
        %742 = vadd.xlane.f32.xlu0 %v741
        %v743 = vpop.xlane.xlu0 %742
        %v744 = vsel %vm474, %v736, 0.0
        %745 = vadd.xlane.f32.xlu0 %v744
        %v746 = vpop.xlane.xlu0 %745
        %v747 = vsel %vm474, %v737, 0.0
        %748 = vadd.xlane.f32.xlu0 %v747
        %v749 = vpop.xlane.xlu0 %748
        %v750 = vmul.f32 %v740, %v481
        %v751 = vmul.f32 %v743, %v481
        %v752 = vmul.f32 %v746, %v481
        %v753 = vmul.f32 %v749, %v481
        %v754 = vld [vmem:[%s5] sm:$0xff]
        %v755 = vld [vmem:[%s5 + $0x8] sm:$0xff]
        %v756 = vld [vmem:[%s5 + $0x10] sm:$0xff]
        %v757 = vld [vmem:[%s5 + $0x18] sm:$0xff]
        %vm758 = vcmask 261120
        %v760 = vsel %vm758, %v754, 0
        %v763 = vsel %vm758, %v755, 0
        %v766 = vsel %vm758, %v756, 0
        %v769 = vsel %vm758, %v757, 0
        %771 = vmatprep.subr.mxu0 0.0
        %772 = vmatpush1.msra.mxu0 %v750
        %773 = vmatprep.subr.mxu0 0.0
        %774 = vmatpush1.msra.mxu0 %v751
        %775 = vmatprep.subr.mxu0 0.0
        %776 = vmatpush1.msra.mxu0 %v752
        %777 = vmatprep.subr.mxu0 0.0
        %778 = vmatpush1.msra.mxu0 %v753
        %779 = vmatprep.subr.mxu0 0.0
        %780 = vmatpush1.msra.mxu0 0.0
        %781 = vmatprep.subr.mxu0 0.0
        %782 = vmatpush1.msra.mxu0 0.0
        %783 = vmatprep.subr.mxu0 0.0
        %784 = vmatpush1.msra.mxu0 0.0
        %785 = vmatprep.subr.mxu0 0.0
        %786 = vmatpush1.msra.mxu0 0.0
        %787 = vmatprep.subr.mxu0 0.0
        %788 = vmatpush1.msra.mxu0 0.0
        %789 = vmatprep.subr.mxu0 0.0
        %790 = vmatpush1.msra.mxu0 0.0
        %791 = vmatprep.subr.mxu0 0.0
        %792 = vmatpush1.msra.mxu0 0.0
        %793 = vmatprep.subr.mxu0 0.0
        %794 = vmatpush1.msra.mxu0 0.0
        %795 = vmatprep.subr.mxu0 0.0
        %796 = vmatpush1.msra.mxu0 0.0
        %797 = vmatprep.subr.mxu0 0.0
        %798 = vmatpush1.msra.mxu0 0.0
        %799 = vmatprep.subr.mxu0 0.0
        %800 = vmatpush1.msra.mxu0 0.0
        %801 = vmatprep.subr.mxu0 0.0
        %802 = vmatpush1.msra.mxu0 0.0
        %803 = vmatprep.subr.mxu0 0.0
        %804 = vmatpush1.msra.mxu0 0.0
        %805 = vmatprep.subr.mxu0 0.0
        %806 = vmatpush1.msra.mxu0 0.0
        %807 = vmatprep.subr.mxu0 0.0
        %808 = vmatpush1.msra.mxu0 0.0
        %809 = vmatprep.subr.mxu0 0.0
        %810 = vmatpush1.msra.mxu0 0.0
        %811 = vmatprep.subr.mxu0 0.0
        %812 = vmatpush1.msra.mxu0 0.0
        %813 = vmatprep.subr.mxu0 0.0
        %814 = vmatpush1.msra.mxu0 0.0
        %815 = vmatprep.subr.mxu0 0.0
        %816 = vmatpush1.msra.mxu0 0.0
        %817 = vmatprep.subr.mxu0 0.0
        %818 = vmatpush1.msra.mxu0 0.0
        %819 = vmatprep.subr.mxu0 0.0
        %820 = vmatpush1.msra.mxu0 0.0
        %821 = vmatprep.subr.mxu0 0.0
        %822 = vmatpush1.msra.mxu0 0.0
        %823 = vmatprep.subr.mxu0 0.0
        %824 = vmatpush1.msra.mxu0 0.0
        %825 = vmatprep.subr.mxu0 0.0
        %826 = vmatpush1.msra.mxu0 0.0
        %827 = vmatprep.subr.mxu0 0.0
        %828 = vmatpush1.msra.mxu0 0.0
        %829 = vmatprep.subr.mxu0 0.0
        %830 = vmatpush1.msra.mxu0 0.0
        %831 = vmatprep.subr.mxu0 0.0
        %832 = vmatpush1.msra.mxu0 0.0
        %833 = vmatprep.subr.mxu0 0.0
        %834 = vmatpush1.msra.mxu0 0.0
        %835 = vmatprep.mubr.f32.mxu0 0.0
        %836 = vmatmul.mubr.f32.gmra.mrb[0].mxu0 %v760
        %v837 = vpop.f32.mrb[0].mxu0
        %v838 = vadd.f32 0.0, %v837
        %v839 = vpop.f32.mrb[0].mxu0
        %840 = vmatprep.mubr.f32.mxu0 0.0
        %841 = vmatmul.mubr.f32.gmra.mrb[0].mxu0 %v763
        %v842 = vpop.f32.mrb[0].mxu0
        %v843 = vadd.f32 0.0, %v842
        %v844 = vpop.f32.mrb[0].mxu0
        %845 = vmatprep.mubr.f32.mxu0 0.0
        %846 = vmatmul.mubr.f32.gmra.mrb[0].mxu0 %v766
        %v847 = vpop.f32.mrb[0].mxu0
        %v848 = vadd.f32 0.0, %v847
        %v849 = vpop.f32.mrb[0].mxu0
        %850 = vmatprep.mubr.f32.mxu0 0.0
        %851 = vmatmul.mubr.f32.gmra.mrb[0].mxu0 %v769
        %v852 = vpop.f32.mrb[0].mxu0
        %v853 = vadd.f32 0.0, %v852
        %v854 = vpop.f32.mrb[0].mxu0
        %855 = vdwg.mxu0
        %v856 = vld [vmem:[%s4] sm:$0xff]
        %v857 = vld [vmem:[%s4 + $0x8] sm:$0xff]
        %v858 = vld [vmem:[%s4 + $0x10] sm:$0xff]
        %v859 = vld [vmem:[%s4 + $0x18] sm:$0xff]
        %861 = vset.pattern.permute.xlu0 0
        %862 = vperm.xlu0 %861, %v838
        %v863 = vpop.permute.xlu0 %862
        %866 = vset.pattern.permute.xlu0 0
        %867 = vperm.xlu0 %866, %v843
        %v868 = vpop.permute.xlu0 %867
        %871 = vset.pattern.permute.xlu0 0
        %872 = vperm.xlu0 %871, %v848
        %v873 = vpop.permute.xlu0 %872
        %876 = vset.pattern.permute.xlu0 0
        %877 = vperm.xlu0 %876, %v853
        %v878 = vpop.permute.xlu0 %877
        %v881 = vsel %vm758, %v856, 0
        %v884 = vsel %vm758, %v857, 0
        %v887 = vsel %vm758, %v858, 0
        %v890 = vsel %vm758, %v859, 0
        %892 = vmatprep.subr.mxu0 0.0
        %893 = vmatpush1.msra.mxu0 %v734
        %894 = vmatprep.subr.mxu0 0.0
        %895 = vmatpush1.msra.mxu0 %v735
        %896 = vmatprep.subr.mxu0 0.0
        %897 = vmatpush1.msra.mxu0 %v736
        %898 = vmatprep.subr.mxu0 0.0
        %899 = vmatpush1.msra.mxu0 %v737
        %900 = vmatprep.subr.mxu0 0.0
        %901 = vmatpush1.msra.mxu0 0.0
        %902 = vmatprep.subr.mxu0 0.0
        %903 = vmatpush1.msra.mxu0 0.0
        %904 = vmatprep.subr.mxu0 0.0
        %905 = vmatpush1.msra.mxu0 0.0
        %906 = vmatprep.subr.mxu0 0.0
        %907 = vmatpush1.msra.mxu0 0.0
        %908 = vmatprep.subr.mxu0 0.0
        %909 = vmatpush1.msra.mxu0 0.0
        %910 = vmatprep.subr.mxu0 0.0
        %911 = vmatpush1.msra.mxu0 0.0
        %912 = vmatprep.subr.mxu0 0.0
        %913 = vmatpush1.msra.mxu0 0.0
        %914 = vmatprep.subr.mxu0 0.0
        %915 = vmatpush1.msra.mxu0 0.0
        %916 = vmatprep.subr.mxu0 0.0
        %917 = vmatpush1.msra.mxu0 0.0
        %918 = vmatprep.subr.mxu0 0.0
        %919 = vmatpush1.msra.mxu0 0.0
        %920 = vmatprep.subr.mxu0 0.0
        %921 = vmatpush1.msra.mxu0 0.0
        %922 = vmatprep.subr.mxu0 0.0
        %923 = vmatpush1.msra.mxu0 0.0
        %924 = vmatprep.subr.mxu0 0.0
        %925 = vmatpush1.msra.mxu0 0.0
        %926 = vmatprep.subr.mxu0 0.0
        %927 = vmatpush1.msra.mxu0 0.0
        %928 = vmatprep.subr.mxu0 0.0
        %929 = vmatpush1.msra.mxu0 0.0
        %930 = vmatprep.subr.mxu0 0.0
        %931 = vmatpush1.msra.mxu0 0.0
        %932 = vmatprep.subr.mxu0 0.0
        %933 = vmatpush1.msra.mxu0 0.0
        %934 = vmatprep.subr.mxu0 0.0
        %935 = vmatpush1.msra.mxu0 0.0
        %936 = vmatprep.subr.mxu0 0.0
        %937 = vmatpush1.msra.mxu0 0.0
        %938 = vmatprep.subr.mxu0 0.0
        %939 = vmatpush1.msra.mxu0 0.0
        %940 = vmatprep.subr.mxu0 0.0
        %941 = vmatpush1.msra.mxu0 0.0
        %942 = vmatprep.subr.mxu0 0.0
        %943 = vmatpush1.msra.mxu0 0.0
        %944 = vmatprep.subr.mxu0 0.0
        %945 = vmatpush1.msra.mxu0 0.0
        %946 = vmatprep.subr.mxu0 0.0
        %947 = vmatpush1.msra.mxu0 0.0
        %948 = vmatprep.subr.mxu0 0.0
        %949 = vmatpush1.msra.mxu0 0.0
        %950 = vmatprep.subr.mxu0 0.0
        %951 = vmatpush1.msra.mxu0 0.0
        %952 = vmatprep.subr.mxu0 0.0
        %953 = vmatpush1.msra.mxu0 0.0
        %954 = vmatprep.subr.mxu0 0.0
        %955 = vmatpush1.msra.mxu0 0.0
        %956 = vmatprep.mubr.f32.mxu0 0.0
        %957 = vmatmul.mubr.f32.gmra.mrb[0].mxu0 %v881
        %v958 = vpop.f32.mrb[0].mxu0
        %v959 = vadd.f32 %v863, %v958
        %v960 = vpop.f32.mrb[0].mxu0
        %961 = vmatprep.mubr.f32.mxu0 0.0
        %962 = vmatmul.mubr.f32.gmra.mrb[0].mxu0 %v884
        %v963 = vpop.f32.mrb[0].mxu0
        %v964 = vadd.f32 %v868, %v963
        %v965 = vpop.f32.mrb[0].mxu0
        %966 = vmatprep.mubr.f32.mxu0 0.0
        %967 = vmatmul.mubr.f32.gmra.mrb[0].mxu0 %v887
        %v968 = vpop.f32.mrb[0].mxu0
        %v969 = vadd.f32 %v873, %v968
        %v970 = vpop.f32.mrb[0].mxu0
        %971 = vmatprep.mubr.f32.mxu0 0.0
        %972 = vmatmul.mubr.f32.gmra.mrb[0].mxu0 %v890
        %v973 = vpop.f32.mrb[0].mxu0
        %v974 = vadd.f32 %v878, %v973
        %v975 = vpop.f32.mrb[0].mxu0
        %976 = vdwg.mxu0
        %v977 = vld [vmem:[%s6] sm:$0xff]
        %v978 = vld [vmem:[%s6 + $0x8] sm:$0xff]
        %v979 = vld [vmem:[%s6 + $0x10] sm:$0xff]
        %v980 = vld [vmem:[%s6 + $0x18] sm:$0xff]
        %982 = vset.pattern.permute.xlu0 0
        %983 = vperm.xlu0 %982, %v977
        %v984 = vpop.permute.xlu0 %983
        %987 = vset.pattern.permute.xlu0 0
        %988 = vperm.xlu0 %987, %v978
        %v989 = vpop.permute.xlu0 %988
        %992 = vset.pattern.permute.xlu0 0
        %993 = vperm.xlu0 %992, %v979
        %v994 = vpop.permute.xlu0 %993
        %997 = vset.pattern.permute.xlu0 0
        %998 = vperm.xlu0 %997, %v980
        %v999 = vpop.permute.xlu0 %998
        %v1001 = vadd.f32 %v959, %v984
        %v1002 = vadd.f32 %v964, %v989
        %v1003 = vadd.f32 %v969, %v994
        %v1004 = vadd.f32 %v974, %v999
        %v1005 = vmax.f32 %v1001, 0.0
        %v1006 = vmax.f32 %v1002, 0.0
        %v1007 = vmax.f32 %v1003, 0.0
        %v1008 = vmax.f32 %v1004, 0.0
        %v1009 = vld [vmem:[%s7] sm:$0xff]
        %v1010 = vld [vmem:[%s7 + $0x8] sm:$0xff]
        %v1011 = vld [vmem:[%s7 + $0x10] sm:$0xff]
        %v1012 = vld [vmem:[%s7 + $0x18] sm:$0xff]
        %v1014 = vsel %vm758, %v1009, 0
        %v1017 = vsel %vm758, %v1010, 0
        %v1020 = vsel %vm758, %v1011, 0
        %v1023 = vsel %vm758, %v1012, 0
        %1025 = vmatprep.subr.mxu0 0.0
        %1026 = vmatpush1.msra.mxu0 %v1005
        %1027 = vmatprep.subr.mxu0 0.0
        %1028 = vmatpush1.msra.mxu0 %v1006
        %1029 = vmatprep.subr.mxu0 0.0
        %1030 = vmatpush1.msra.mxu0 %v1007
        %1031 = vmatprep.subr.mxu0 0.0
        %1032 = vmatpush1.msra.mxu0 %v1008
        %1033 = vmatprep.subr.mxu0 0.0
        %1034 = vmatpush1.msra.mxu0 0.0
        %1035 = vmatprep.subr.mxu0 0.0
        %1036 = vmatpush1.msra.mxu0 0.0
        %1037 = vmatprep.subr.mxu0 0.0
        %1038 = vmatpush1.msra.mxu0 0.0
        %1039 = vmatprep.subr.mxu0 0.0
        %1040 = vmatpush1.msra.mxu0 0.0
        %1041 = vmatprep.subr.mxu0 0.0
        %1042 = vmatpush1.msra.mxu0 0.0
        %1043 = vmatprep.subr.mxu0 0.0
        %1044 = vmatpush1.msra.mxu0 0.0
        %1045 = vmatprep.subr.mxu0 0.0
        %1046 = vmatpush1.msra.mxu0 0.0
        %1047 = vmatprep.subr.mxu0 0.0
        %1048 = vmatpush1.msra.mxu0 0.0
        %1049 = vmatprep.subr.mxu0 0.0
        %1050 = vmatpush1.msra.mxu0 0.0
        %1051 = vmatprep.subr.mxu0 0.0
        %1052 = vmatpush1.msra.mxu0 0.0
        %1053 = vmatprep.subr.mxu0 0.0
        %1054 = vmatpush1.msra.mxu0 0.0
        %1055 = vmatprep.subr.mxu0 0.0
        %1056 = vmatpush1.msra.mxu0 0.0
        %1057 = vmatprep.subr.mxu0 0.0
        %1058 = vmatpush1.msra.mxu0 0.0
        %1059 = vmatprep.subr.mxu0 0.0
        %1060 = vmatpush1.msra.mxu0 0.0
        %1061 = vmatprep.subr.mxu0 0.0
        %1062 = vmatpush1.msra.mxu0 0.0
        %1063 = vmatprep.subr.mxu0 0.0
        %1064 = vmatpush1.msra.mxu0 0.0
        %1065 = vmatprep.subr.mxu0 0.0
        %1066 = vmatpush1.msra.mxu0 0.0
        %1067 = vmatprep.subr.mxu0 0.0
        %1068 = vmatpush1.msra.mxu0 0.0
        %1069 = vmatprep.subr.mxu0 0.0
        %1070 = vmatpush1.msra.mxu0 0.0
        %1071 = vmatprep.subr.mxu0 0.0
        %1072 = vmatpush1.msra.mxu0 0.0
        %1073 = vmatprep.subr.mxu0 0.0
        %1074 = vmatpush1.msra.mxu0 0.0
        %1075 = vmatprep.subr.mxu0 0.0
        %1076 = vmatpush1.msra.mxu0 0.0
        %1077 = vmatprep.subr.mxu0 0.0
        %1078 = vmatpush1.msra.mxu0 0.0
        %1079 = vmatprep.subr.mxu0 0.0
        %1080 = vmatpush1.msra.mxu0 0.0
        %1081 = vmatprep.subr.mxu0 0.0
        %1082 = vmatpush1.msra.mxu0 0.0
        %1083 = vmatprep.subr.mxu0 0.0
        %1084 = vmatpush1.msra.mxu0 0.0
        %1085 = vmatprep.subr.mxu0 0.0
        %1086 = vmatpush1.msra.mxu0 0.0
        %1087 = vmatprep.subr.mxu0 0.0
        %1088 = vmatpush1.msra.mxu0 0.0
        %1089 = vmatprep.mubr.f32.mxu0 0.0
        %1090 = vmatmul.mubr.f32.gmra.mrb[0].mxu0 %v1014
        %v1091 = vpop.f32.mrb[0].mxu0
        %v1092 = vadd.f32 0.0, %v1091
        %v1093 = vpop.f32.mrb[0].mxu0
        %1094 = vmatprep.mubr.f32.mxu0 0.0
        %1095 = vmatmul.mubr.f32.gmra.mrb[0].mxu0 %v1017
        %v1096 = vpop.f32.mrb[0].mxu0
        %v1097 = vadd.f32 0.0, %v1096
        %v1098 = vpop.f32.mrb[0].mxu0
        %1099 = vmatprep.mubr.f32.mxu0 0.0
        %1100 = vmatmul.mubr.f32.gmra.mrb[0].mxu0 %v1020
        %v1101 = vpop.f32.mrb[0].mxu0
        %v1102 = vadd.f32 0.0, %v1101
        %v1103 = vpop.f32.mrb[0].mxu0
        %1104 = vmatprep.mubr.f32.mxu0 0.0
        %1105 = vmatmul.mubr.f32.gmra.mrb[0].mxu0 %v1023
        %v1106 = vpop.f32.mrb[0].mxu0
        %v1107 = vadd.f32 0.0, %v1106
        %v1108 = vpop.f32.mrb[0].mxu0
        %1109 = vdwg.mxu0
        %v1110 = vld [vmem:[%s8] sm:$0xff]
        %v1111 = vld [vmem:[%s8 + $0x8] sm:$0xff]
        %v1112 = vld [vmem:[%s8 + $0x10] sm:$0xff]
        %v1113 = vld [vmem:[%s8 + $0x18] sm:$0xff]
        %v1115 = vsel %vm758, %v1110, 0
        %v1118 = vsel %vm758, %v1111, 0
        %v1121 = vsel %vm758, %v1112, 0
        %v1124 = vsel %vm758, %v1113, 0
        %1126 = vmatprep.subr.mxu0 0.0
        %1127 = vmatpush1.msra.mxu0 %v1005
        %1128 = vmatprep.subr.mxu0 0.0
        %1129 = vmatpush1.msra.mxu0 %v1006
        %1130 = vmatprep.subr.mxu0 0.0
        %1131 = vmatpush1.msra.mxu0 %v1007
        %1132 = vmatprep.subr.mxu0 0.0
        %1133 = vmatpush1.msra.mxu0 %v1008
        %1134 = vmatprep.subr.mxu0 0.0
        %1135 = vmatpush1.msra.mxu0 0.0
        %1136 = vmatprep.subr.mxu0 0.0
        %1137 = vmatpush1.msra.mxu0 0.0
        %1138 = vmatprep.subr.mxu0 0.0
        %1139 = vmatpush1.msra.mxu0 0.0
        %1140 = vmatprep.subr.mxu0 0.0
        %1141 = vmatpush1.msra.mxu0 0.0
        %1142 = vmatprep.subr.mxu0 0.0
        %1143 = vmatpush1.msra.mxu0 0.0
        %1144 = vmatprep.subr.mxu0 0.0
        %1145 = vmatpush1.msra.mxu0 0.0
        %1146 = vmatprep.subr.mxu0 0.0
        %1147 = vmatpush1.msra.mxu0 0.0
        %1148 = vmatprep.subr.mxu0 0.0
        %1149 = vmatpush1.msra.mxu0 0.0
        %1150 = vmatprep.subr.mxu0 0.0
        %1151 = vmatpush1.msra.mxu0 0.0
        %1152 = vmatprep.subr.mxu0 0.0
        %1153 = vmatpush1.msra.mxu0 0.0
        %1154 = vmatprep.subr.mxu0 0.0
        %1155 = vmatpush1.msra.mxu0 0.0
        %1156 = vmatprep.subr.mxu0 0.0
        %1157 = vmatpush1.msra.mxu0 0.0
        %1158 = vmatprep.subr.mxu0 0.0
        %1159 = vmatpush1.msra.mxu0 0.0
        %1160 = vmatprep.subr.mxu0 0.0
        %1161 = vmatpush1.msra.mxu0 0.0
        %1162 = vmatprep.subr.mxu0 0.0
        %1163 = vmatpush1.msra.mxu0 0.0
        %1164 = vmatprep.subr.mxu0 0.0
        %1165 = vmatpush1.msra.mxu0 0.0
        %1166 = vmatprep.subr.mxu0 0.0
        %1167 = vmatpush1.msra.mxu0 0.0
        %1168 = vmatprep.subr.mxu0 0.0
        %1169 = vmatpush1.msra.mxu0 0.0
        %1170 = vmatprep.subr.mxu0 0.0
        %1171 = vmatpush1.msra.mxu0 0.0
        %1172 = vmatprep.subr.mxu0 0.0
        %1173 = vmatpush1.msra.mxu0 0.0
        %1174 = vmatprep.subr.mxu0 0.0
        %1175 = vmatpush1.msra.mxu0 0.0
        %1176 = vmatprep.subr.mxu0 0.0
        %1177 = vmatpush1.msra.mxu0 0.0
        %1178 = vmatprep.subr.mxu0 0.0
        %1179 = vmatpush1.msra.mxu0 0.0
        %1180 = vmatprep.subr.mxu0 0.0
        %1181 = vmatpush1.msra.mxu0 0.0
        %1182 = vmatprep.subr.mxu0 0.0
        %1183 = vmatpush1.msra.mxu0 0.0
        %1184 = vmatprep.subr.mxu0 0.0
        %1185 = vmatpush1.msra.mxu0 0.0
        %1186 = vmatprep.subr.mxu0 0.0
        %1187 = vmatpush1.msra.mxu0 0.0
        %1188 = vmatprep.subr.mxu0 0.0
        %1189 = vmatpush1.msra.mxu0 0.0
        %1190 = vmatprep.mubr.f32.mxu0 0.0
        %1191 = vmatmul.mubr.f32.gmra.mrb[0].mxu0 %v1115
        %v1192 = vpop.f32.mrb[0].mxu0
        %v1193 = vadd.f32 0.0, %v1192
        %v1194 = vpop.f32.mrb[0].mxu0
        %1195 = vmatprep.mubr.f32.mxu0 0.0
        %1196 = vmatmul.mubr.f32.gmra.mrb[0].mxu0 %v1118
        %v1197 = vpop.f32.mrb[0].mxu0
        %v1198 = vadd.f32 0.0, %v1197
        %v1199 = vpop.f32.mrb[0].mxu0
        %1200 = vmatprep.mubr.f32.mxu0 0.0
        %1201 = vmatmul.mubr.f32.gmra.mrb[0].mxu0 %v1121
        %v1202 = vpop.f32.mrb[0].mxu0
        %v1203 = vadd.f32 0.0, %v1202
        %v1204 = vpop.f32.mrb[0].mxu0
        %1205 = vmatprep.mubr.f32.mxu0 0.0
        %1206 = vmatmul.mubr.f32.gmra.mrb[0].mxu0 %v1124
        %v1207 = vpop.f32.mrb[0].mxu0
        %v1208 = vadd.f32 0.0, %v1207
        %v1209 = vpop.f32.mrb[0].mxu0
        %1210 = vdwg.mxu0
        %1211 = vst.msk [vmem:[#allocation3] sm:$0xff] %vm474, %v1193
        %1212 = vst.msk [vmem:[#allocation3 + $0x8] sm:$0xff] %vm474, %v1198
        %1213 = vst.msk [vmem:[#allocation3 + $0x10] sm:$0xff] %vm474, %v1203
        %1214 = vst.msk [vmem:[#allocation3 + $0x18] sm:$0xff] %vm474, %v1208
        %vm1215 = vcmask 64512
        %1216 = vst.msk [vmem:[#allocation2] sm:$0xff] %vm1215, %v1092
        %1217 = vst.msk [vmem:[#allocation2 + $0x8] sm:$0xff] %vm1215, %v1097
        %1218 = vst.msk [vmem:[#allocation2 + $0x10] sm:$0xff] %vm1215, %v1102
        %1219 = vst.msk [vmem:[#allocation2 + $0x18] sm:$0xff] %vm1215, %v1107
        %1224 = vrot.lane.b32.xlu0 %v1092, 120
        %v1225 = vpop.permute.xlu0 %1224
        %1226 = vrot.lane.b32.xlu0 %v1097, 120
        %v1227 = vpop.permute.xlu0 %1226
        %1228 = vrot.lane.b32.xlu0 %v1102, 120
        %v1229 = vpop.permute.xlu0 %1228
        %1230 = vrot.lane.b32.xlu0 %v1107, 120
        %v1231 = vpop.permute.xlu0 %1230
        %s1236 = scalar_lea.vmem [#allocation2], 32
        %1237 = vst.msk [vmem:[%s1236] sm:$0xff] %vm1215, %v1225
        %1238 = vst.msk [vmem:[%s1236 + $0x8] sm:$0xff] %vm1215, %v1227
        %1239 = vst.msk [vmem:[%s1236 + $0x10] sm:$0xff] %vm1215, %v1229
        %1240 = vst.msk [vmem:[%s1236 + $0x18] sm:$0xff] %vm1215, %v1231
      $region80: #{gnn_forward_pallas.1} parent=75 // pred_fallthru
        _
      %s1241 = smul.u32 %s31, 2
      %s1242 = sadd.s32 %s1241, %s32
      %s1243 = smul.u32 %s1242, 32
      %s1244 = scalar_lea.vmem [#allocation2], %s1243
      %v1245 = vld [vmem:[%s1244] sm:$0xff]
      %v1246 = vld [vmem:[%s1244 + $0x8] sm:$0xff]
      %v1247 = vld [vmem:[%s1244 + $0x10] sm:$0xff]
      %v1248 = vld [vmem:[%s1244 + $0x18] sm:$0xff]
      %1250 = vset.pattern.permute.xlu0 0
      %1251 = vperm.xlu0 %1250, %v1245
      %v1252 = vpop.permute.xlu0 %1251
      %1255 = vset.pattern.permute.xlu0 0
      %1256 = vperm.xlu0 %1255, %v1246
      %v1257 = vpop.permute.xlu0 %1256
      %1260 = vset.pattern.permute.xlu0 0
      %1261 = vperm.xlu0 %1260, %v1247
      %v1262 = vpop.permute.xlu0 %1261
      %1265 = vset.pattern.permute.xlu0 0
      %1266 = vperm.xlu0 %1265, %v1248
      %v1267 = vpop.permute.xlu0 %1266
      %1269 = vset.pattern.permute.xlu0 1
      %1270 = vperm.xlu0 %1269, %v1245
      %v1271 = vpop.permute.xlu0 %1270
      %1273 = vset.pattern.permute.xlu0 1
      %1274 = vperm.xlu0 %1273, %v1246
      %v1275 = vpop.permute.xlu0 %1274
      %1277 = vset.pattern.permute.xlu0 1
      %1278 = vperm.xlu0 %1277, %v1247
      %v1279 = vpop.permute.xlu0 %1278
      %1281 = vset.pattern.permute.xlu0 1
      %1282 = vperm.xlu0 %1281, %v1248
      %v1283 = vpop.permute.xlu0 %1282
      %1285 = vset.pattern.permute.xlu0 2
      %1286 = vperm.xlu0 %1285, %v1245
      %v1287 = vpop.permute.xlu0 %1286
      %1289 = vset.pattern.permute.xlu0 2
      %1290 = vperm.xlu0 %1289, %v1246
      %v1291 = vpop.permute.xlu0 %1290
      %1293 = vset.pattern.permute.xlu0 2
      %1294 = vperm.xlu0 %1293, %v1247
      %v1295 = vpop.permute.xlu0 %1294
      %1297 = vset.pattern.permute.xlu0 2
      %1298 = vperm.xlu0 %1297, %v1248
      %v1299 = vpop.permute.xlu0 %1298
      %1301 = vset.pattern.permute.xlu0 3
      %1302 = vperm.xlu0 %1301, %v1245
      %v1303 = vpop.permute.xlu0 %1302
      %1305 = vset.pattern.permute.xlu0 3
      %1306 = vperm.xlu0 %1305, %v1246
      %v1307 = vpop.permute.xlu0 %1306
      %1309 = vset.pattern.permute.xlu0 3
      %1310 = vperm.xlu0 %1309, %v1247
      %v1311 = vpop.permute.xlu0 %1310
      %1313 = vset.pattern.permute.xlu0 3
      %1314 = vperm.xlu0 %1313, %v1248
      %v1315 = vpop.permute.xlu0 %1314
      %1317 = vset.pattern.permute.xlu0 4
      %1318 = vperm.xlu0 %1317, %v1245
      %v1319 = vpop.permute.xlu0 %1318
      %1321 = vset.pattern.permute.xlu0 4
      %1322 = vperm.xlu0 %1321, %v1246
      %v1323 = vpop.permute.xlu0 %1322
      %1325 = vset.pattern.permute.xlu0 4
      %1326 = vperm.xlu0 %1325, %v1247
      %v1327 = vpop.permute.xlu0 %1326
      %1329 = vset.pattern.permute.xlu0 4
      %1330 = vperm.xlu0 %1329, %v1248
      %v1331 = vpop.permute.xlu0 %1330
      %1333 = vset.pattern.permute.xlu0 5
      %1334 = vperm.xlu0 %1333, %v1245
      %v1335 = vpop.permute.xlu0 %1334
      %1337 = vset.pattern.permute.xlu0 5
      %1338 = vperm.xlu0 %1337, %v1246
      %v1339 = vpop.permute.xlu0 %1338
      %1341 = vset.pattern.permute.xlu0 5
      %1342 = vperm.xlu0 %1341, %v1247
      %v1343 = vpop.permute.xlu0 %1342
      %1345 = vset.pattern.permute.xlu0 5
      %1346 = vperm.xlu0 %1345, %v1248
      %v1347 = vpop.permute.xlu0 %1346
      %1349 = vset.pattern.permute.xlu0 6
      %1350 = vperm.xlu0 %1349, %v1245
      %v1351 = vpop.permute.xlu0 %1350
      %1353 = vset.pattern.permute.xlu0 6
      %1354 = vperm.xlu0 %1353, %v1246
      %v1355 = vpop.permute.xlu0 %1354
      %1357 = vset.pattern.permute.xlu0 6
      %1358 = vperm.xlu0 %1357, %v1247
      %v1359 = vpop.permute.xlu0 %1358
      %1361 = vset.pattern.permute.xlu0 6
      %1362 = vperm.xlu0 %1361, %v1248
      %v1363 = vpop.permute.xlu0 %1362
      %1365 = vset.pattern.permute.xlu0 7
      %1366 = vperm.xlu0 %1365, %v1245
      %v1367 = vpop.permute.xlu0 %1366
      %1369 = vset.pattern.permute.xlu0 7
      %1370 = vperm.xlu0 %1369, %v1246
      %v1371 = vpop.permute.xlu0 %1370
      %1373 = vset.pattern.permute.xlu0 7
      %1374 = vperm.xlu0 %1373, %v1247
      %v1375 = vpop.permute.xlu0 %1374
      %1377 = vset.pattern.permute.xlu0 7
      %1378 = vperm.xlu0 %1377, %v1248
      %v1379 = vpop.permute.xlu0 %1378
      %vm1381 = vcmask 130048
      %v1382 = vsel %vm1381, %v1252, %v1271
      %v1383 = vsel %vm1381, %v1257, %v1275
      %v1384 = vsel %vm1381, %v1262, %v1279
      %v1385 = vsel %vm1381, %v1267, %v1283
      %vm1386 = vcmask 261120
      %v1387 = vsel %vm1386, %v1382, %v1287
      %v1388 = vsel %vm1386, %v1383, %v1291
      %v1389 = vsel %vm1386, %v1384, %v1295
      %v1390 = vsel %vm1386, %v1385, %v1299
      %vm1391 = vcmask 392192
      %v1392 = vsel %vm1391, %v1387, %v1303
      %v1393 = vsel %vm1391, %v1388, %v1307
      %v1394 = vsel %vm1391, %v1389, %v1311
      %v1395 = vsel %vm1391, %v1390, %v1315
      %vm1396 = vcmask 523264
      %v1397 = vsel %vm1396, %v1392, %v1319
      %v1398 = vsel %vm1396, %v1393, %v1323
      %v1399 = vsel %vm1396, %v1394, %v1327
      %v1400 = vsel %vm1396, %v1395, %v1331
      %vm1401 = vcmask 654336
      %v1402 = vsel %vm1401, %v1397, %v1335
      %v1403 = vsel %vm1401, %v1398, %v1339
      %v1404 = vsel %vm1401, %v1399, %v1343
      %v1405 = vsel %vm1401, %v1400, %v1347
      %vm1406 = vcmask 785408
      %v1407 = vsel %vm1406, %v1402, %v1351
      %v1408 = vsel %vm1406, %v1403, %v1355
      %v1409 = vsel %vm1406, %v1404, %v1359
      %v1410 = vsel %vm1406, %v1405, %v1363
      %vm1411 = vcmask 916480
      %v1412 = vsel %vm1411, %v1407, %v1367
      %v1413 = vsel %vm1411, %v1408, %v1371
      %v1414 = vsel %vm1411, %v1409, %v1375
      %v1415 = vsel %vm1411, %v1410, %v1379
      %v1416 = vld [vmem:[#allocation3] sm:$0xff]
      %v1417 = vld [vmem:[#allocation3 + $0x8] sm:$0xff]
      %v1418 = vld [vmem:[#allocation3 + $0x10] sm:$0xff]
      %v1419 = vld [vmem:[#allocation3 + $0x18] sm:$0xff]
      %1424 = vrot.lane.b32.xlu0 %v1416, 16
      %v1425 = vpop.permute.xlu0 %1424
      %1426 = vrot.lane.b32.xlu0 %v1417, 16
      %v1427 = vpop.permute.xlu0 %1426
      %1428 = vrot.lane.b32.xlu0 %v1418, 16
      %v1429 = vpop.permute.xlu0 %1428
      %1430 = vrot.lane.b32.xlu0 %v1419, 16
      %v1431 = vpop.permute.xlu0 %1430
      %1436 = vrot.lane.b32.xlu0 %v1416, 32
      %v1437 = vpop.permute.xlu0 %1436
      %1438 = vrot.lane.b32.xlu0 %v1417, 32
      %v1439 = vpop.permute.xlu0 %1438
      %1440 = vrot.lane.b32.xlu0 %v1418, 32
      %v1441 = vpop.permute.xlu0 %1440
      %1442 = vrot.lane.b32.xlu0 %v1419, 32
      %v1443 = vpop.permute.xlu0 %1442
      %1448 = vrot.lane.b32.xlu0 %v1416, 48
      %v1449 = vpop.permute.xlu0 %1448
      %1450 = vrot.lane.b32.xlu0 %v1417, 48
      %v1451 = vpop.permute.xlu0 %1450
      %1452 = vrot.lane.b32.xlu0 %v1418, 48
      %v1453 = vpop.permute.xlu0 %1452
      %1454 = vrot.lane.b32.xlu0 %v1419, 48
      %v1455 = vpop.permute.xlu0 %1454
      %1460 = vrot.lane.b32.xlu0 %v1416, 64
      %v1461 = vpop.permute.xlu0 %1460
      %1462 = vrot.lane.b32.xlu0 %v1417, 64
      %v1463 = vpop.permute.xlu0 %1462
      %1464 = vrot.lane.b32.xlu0 %v1418, 64
      %v1465 = vpop.permute.xlu0 %1464
      %1466 = vrot.lane.b32.xlu0 %v1419, 64
      %v1467 = vpop.permute.xlu0 %1466
      %1472 = vrot.lane.b32.xlu0 %v1416, 80
      %v1473 = vpop.permute.xlu0 %1472
      %1474 = vrot.lane.b32.xlu0 %v1417, 80
      %v1475 = vpop.permute.xlu0 %1474
      %1476 = vrot.lane.b32.xlu0 %v1418, 80
      %v1477 = vpop.permute.xlu0 %1476
      %1478 = vrot.lane.b32.xlu0 %v1419, 80
      %v1479 = vpop.permute.xlu0 %1478
      %1484 = vrot.lane.b32.xlu0 %v1416, 96
      %v1485 = vpop.permute.xlu0 %1484
      %1486 = vrot.lane.b32.xlu0 %v1417, 96
      %v1487 = vpop.permute.xlu0 %1486
      %1488 = vrot.lane.b32.xlu0 %v1418, 96
      %v1489 = vpop.permute.xlu0 %1488
      %1490 = vrot.lane.b32.xlu0 %v1419, 96
      %v1491 = vpop.permute.xlu0 %1490
      %1496 = vrot.lane.b32.xlu0 %v1416, 112
      %v1497 = vpop.permute.xlu0 %1496
      %1498 = vrot.lane.b32.xlu0 %v1417, 112
      %v1499 = vpop.permute.xlu0 %1498
      %1500 = vrot.lane.b32.xlu0 %v1418, 112
      %v1501 = vpop.permute.xlu0 %1500
      %1502 = vrot.lane.b32.xlu0 %v1419, 112
      %v1503 = vpop.permute.xlu0 %1502
      %v1508 = vsel %vm1381, %v1416, %v1425
      %v1509 = vsel %vm1381, %v1417, %v1427
      %v1510 = vsel %vm1381, %v1418, %v1429
      %v1511 = vsel %vm1381, %v1419, %v1431
      %v1512 = vsel %vm1386, %v1508, %v1437
      %v1513 = vsel %vm1386, %v1509, %v1439
      %v1514 = vsel %vm1386, %v1510, %v1441
      %v1515 = vsel %vm1386, %v1511, %v1443
      %v1516 = vsel %vm1391, %v1512, %v1449
      %v1517 = vsel %vm1391, %v1513, %v1451
      %v1518 = vsel %vm1391, %v1514, %v1453
      %v1519 = vsel %vm1391, %v1515, %v1455
      %v1520 = vsel %vm1396, %v1516, %v1461
      %v1521 = vsel %vm1396, %v1517, %v1463
      %v1522 = vsel %vm1396, %v1518, %v1465
      %v1523 = vsel %vm1396, %v1519, %v1467
      %v1524 = vsel %vm1401, %v1520, %v1473
      %v1525 = vsel %vm1401, %v1521, %v1475
      %v1526 = vsel %vm1401, %v1522, %v1477
      %v1527 = vsel %vm1401, %v1523, %v1479
      %v1528 = vsel %vm1406, %v1524, %v1485
      %v1529 = vsel %vm1406, %v1525, %v1487
      %v1530 = vsel %vm1406, %v1526, %v1489
      %v1531 = vsel %vm1406, %v1527, %v1491
      %v1532 = vsel %vm1411, %v1528, %v1497
      %v1533 = vsel %vm1411, %v1529, %v1499
      %v1534 = vsel %vm1411, %v1530, %v1501
      %v1535 = vsel %vm1411, %v1531, %v1503
      %v1536 = vadd.f32 %v1412, %v1532
      %v1537 = vadd.f32 %v1413, %v1533
      %v1538 = vadd.f32 %v1414, %v1534
      %v1539 = vadd.f32 %v1415, %v1535
      %v1540 = vld [vmem:[%s9] sm:$0xff]
      %v1541 = vld [vmem:[%s9 + $0x8] sm:$0xff]
      %v1542 = vld [vmem:[%s9 + $0x10] sm:$0xff]
      %v1543 = vld [vmem:[%s9 + $0x18] sm:$0xff]
      %1545 = vset.pattern.permute.xlu0 0
      %1546 = vperm.xlu0 %1545, %v1540
      %v1547 = vpop.permute.xlu0 %1546
      %1550 = vset.pattern.permute.xlu0 0
      %1551 = vperm.xlu0 %1550, %v1541
      %v1552 = vpop.permute.xlu0 %1551
      %1555 = vset.pattern.permute.xlu0 0
      %1556 = vperm.xlu0 %1555, %v1542
      %v1557 = vpop.permute.xlu0 %1556
      %1560 = vset.pattern.permute.xlu0 0
      %1561 = vperm.xlu0 %1560, %v1543
      %v1562 = vpop.permute.xlu0 %1561
      %v1564 = vadd.f32 %v1536, %v1547
      %v1565 = vadd.f32 %v1537, %v1552
      %v1566 = vadd.f32 %v1538, %v1557
      %v1567 = vadd.f32 %v1539, %v1562
      %v1568 = vmax.f32 %v1564, 0.0
      %v1569 = vmax.f32 %v1565, 0.0
      %v1570 = vmax.f32 %v1566, 0.0
      %v1571 = vmax.f32 %v1567, 0.0
      %v1572 = vld [vmem:[%s10] sm:$0xff]
      %v1573 = vld [vmem:[%s10 + $0x8] sm:$0xff]
      %v1574 = vld [vmem:[%s10 + $0x10] sm:$0xff]
      %v1575 = vld [vmem:[%s10 + $0x18] sm:$0xff]
      %v1576 = vld [vmem:[%s11] sm:$0xff]
      %v1577 = vld [vmem:[%s11 + $0x8] sm:$0xff]
      %v1578 = vld [vmem:[%s11 + $0x10] sm:$0xff]
      %v1579 = vld [vmem:[%s11 + $0x18] sm:$0xff]
      %1581 = vset.pattern.permute.xlu0 0
      %1582 = vperm.xlu0 %1581, %v1576
      %v1583 = vpop.permute.xlu0 %1582
      %1586 = vset.pattern.permute.xlu0 0
      %1587 = vperm.xlu0 %1586, %v1577
      %v1588 = vpop.permute.xlu0 %1587
      %1591 = vset.pattern.permute.xlu0 0
      %1592 = vperm.xlu0 %1591, %v1578
      %v1593 = vpop.permute.xlu0 %1592
      %1596 = vset.pattern.permute.xlu0 0
      %1597 = vperm.xlu0 %1596, %v1579
      %v1598 = vpop.permute.xlu0 %1597
      %v1601 = vsel %vm1386, %v1572, 0
      %v1604 = vsel %vm1386, %v1573, 0
      %v1607 = vsel %vm1386, %v1574, 0
      %v1610 = vsel %vm1386, %v1575, 0
      %1612 = vmatprep.subr.mxu0 0.0
      %1613 = vmatpush1.msra.mxu0 %v1568
      %1614 = vmatprep.subr.mxu0 0.0
      %1615 = vmatpush1.msra.mxu0 %v1569
      %1616 = vmatprep.subr.mxu0 0.0
      %1617 = vmatpush1.msra.mxu0 %v1570
      %1618 = vmatprep.subr.mxu0 0.0
      %1619 = vmatpush1.msra.mxu0 %v1571
      %1620 = vmatprep.subr.mxu0 0.0
      %1621 = vmatpush1.msra.mxu0 0.0
      %1622 = vmatprep.subr.mxu0 0.0
      %1623 = vmatpush1.msra.mxu0 0.0
      %1624 = vmatprep.subr.mxu0 0.0
      %1625 = vmatpush1.msra.mxu0 0.0
      %1626 = vmatprep.subr.mxu0 0.0
      %1627 = vmatpush1.msra.mxu0 0.0
      %1628 = vmatprep.subr.mxu0 0.0
      %1629 = vmatpush1.msra.mxu0 0.0
      %1630 = vmatprep.subr.mxu0 0.0
      %1631 = vmatpush1.msra.mxu0 0.0
      %1632 = vmatprep.subr.mxu0 0.0
      %1633 = vmatpush1.msra.mxu0 0.0
      %1634 = vmatprep.subr.mxu0 0.0
      %1635 = vmatpush1.msra.mxu0 0.0
      %1636 = vmatprep.subr.mxu0 0.0
      %1637 = vmatpush1.msra.mxu0 0.0
      %1638 = vmatprep.subr.mxu0 0.0
      %1639 = vmatpush1.msra.mxu0 0.0
      %1640 = vmatprep.subr.mxu0 0.0
      %1641 = vmatpush1.msra.mxu0 0.0
      %1642 = vmatprep.subr.mxu0 0.0
      %1643 = vmatpush1.msra.mxu0 0.0
      %1644 = vmatprep.subr.mxu0 0.0
      %1645 = vmatpush1.msra.mxu0 0.0
      %1646 = vmatprep.subr.mxu0 0.0
      %1647 = vmatpush1.msra.mxu0 0.0
      %1648 = vmatprep.subr.mxu0 0.0
      %1649 = vmatpush1.msra.mxu0 0.0
      %1650 = vmatprep.subr.mxu0 0.0
      %1651 = vmatpush1.msra.mxu0 0.0
      %1652 = vmatprep.subr.mxu0 0.0
      %1653 = vmatpush1.msra.mxu0 0.0
      %1654 = vmatprep.subr.mxu0 0.0
      %1655 = vmatpush1.msra.mxu0 0.0
      %1656 = vmatprep.subr.mxu0 0.0
      %1657 = vmatpush1.msra.mxu0 0.0
      %1658 = vmatprep.subr.mxu0 0.0
      %1659 = vmatpush1.msra.mxu0 0.0
      %1660 = vmatprep.subr.mxu0 0.0
      %1661 = vmatpush1.msra.mxu0 0.0
      %1662 = vmatprep.subr.mxu0 0.0
      %1663 = vmatpush1.msra.mxu0 0.0
      %1664 = vmatprep.subr.mxu0 0.0
      %1665 = vmatpush1.msra.mxu0 0.0
      %1666 = vmatprep.subr.mxu0 0.0
      %1667 = vmatpush1.msra.mxu0 0.0
      %1668 = vmatprep.subr.mxu0 0.0
      %1669 = vmatpush1.msra.mxu0 0.0
      %1670 = vmatprep.subr.mxu0 0.0
      %1671 = vmatpush1.msra.mxu0 0.0
      %1672 = vmatprep.subr.mxu0 0.0
      %1673 = vmatpush1.msra.mxu0 0.0
      %1674 = vmatprep.subr.mxu0 0.0
      %1675 = vmatpush1.msra.mxu0 0.0
      %1676 = vmatprep.mubr.f32.mxu0 0.0
      %1677 = vmatmul.mubr.f32.gmra.mrb[0].mxu0 %v1601
      %v1678 = vpop.f32.mrb[0].mxu0
      %v1679 = vadd.f32 %v1583, %v1678
      %v1680 = vpop.f32.mrb[0].mxu0
      %1681 = vmatprep.mubr.f32.mxu0 0.0
      %1682 = vmatmul.mubr.f32.gmra.mrb[0].mxu0 %v1604
      %v1683 = vpop.f32.mrb[0].mxu0
      %v1684 = vadd.f32 %v1588, %v1683
      %v1685 = vpop.f32.mrb[0].mxu0
      %1686 = vmatprep.mubr.f32.mxu0 0.0
      %1687 = vmatmul.mubr.f32.gmra.mrb[0].mxu0 %v1607
      %v1688 = vpop.f32.mrb[0].mxu0
      %v1689 = vadd.f32 %v1593, %v1688
      %v1690 = vpop.f32.mrb[0].mxu0
      %1691 = vmatprep.mubr.f32.mxu0 0.0
      %1692 = vmatmul.mubr.f32.gmra.mrb[0].mxu0 %v1610
      %v1693 = vpop.f32.mrb[0].mxu0
      %v1694 = vadd.f32 %v1598, %v1693
      %v1695 = vpop.f32.mrb[0].mxu0
      %1696 = vdwg.mxu0
      %v1697 = vmax.f32 %v1679, 0.0
      %v1698 = vmax.f32 %v1684, 0.0
      %v1699 = vmax.f32 %v1689, 0.0
      %v1700 = vmax.f32 %v1694, 0.0
      %v1701 = vld [vmem:[%s12] sm:$0xff]
      %v1702 = vld [vmem:[%s12 + $0x8] sm:$0xff]
      %v1703 = vld [vmem:[%s12 + $0x10] sm:$0xff]
      %v1704 = vld [vmem:[%s12 + $0x18] sm:$0xff]
      %1706 = vset.pattern.permute.xlu0 0
      %1707 = vperm.xlu0 %1706, %v1701
      %v1708 = vpop.permute.xlu0 %1707
      %1711 = vset.pattern.permute.xlu0 0
      %1712 = vperm.xlu0 %1711, %v1702
      %v1713 = vpop.permute.xlu0 %1712
      %1716 = vset.pattern.permute.xlu0 0
      %1717 = vperm.xlu0 %1716, %v1703
      %v1718 = vpop.permute.xlu0 %1717
      %1721 = vset.pattern.permute.xlu0 0
      %1722 = vperm.xlu0 %1721, %v1704
      %v1723 = vpop.permute.xlu0 %1722
      %v1725 = vmul.f32 %v1697, %v1708
      %v1726 = vmul.f32 %v1698, %v1713
      %v1727 = vmul.f32 %v1699, %v1718
      %v1728 = vmul.f32 %v1700, %v1723
      %v1729 = vadd.f32 %v1725, %v1726
      %v1730 = vadd.f32 %v1729, %v1727
      %v1731 = vadd.f32 %v1730, %v1728
      %v1732 = vrot.slane %v1731, 4
      %v1733 = vadd.f32 %v1731, %v1732
      %v1734 = vrot.slane %v1733, 2
      %v1735 = vadd.f32 %v1733, %v1734
      %v1736 = vrot.slane %v1735, 1
      %v1737 = vadd.f32 %v1735, %v1736
      %v1738 = vld [vmem:[#allocation4] sm:$0x1]
      %1740 = vset.pattern.permute.xlu0 0
      %1741 = vperm.xlu0 %1740, %v1738
      %v1742 = vpop.permute.xlu0 %1741
      %v1744 = vlaneseq
      %v1745 = vshrl.u32 %v1744, 7
      %v1746 = vsub.s32 0, %v1745
      %v1747 = vrot.slane %v1742, %v1746
      %v1748 = vadd.f32 %v1737, %v1747
      %v1749 = vxor.u32 %v1748, 2147483648
      %v1750 = vmul.f32 %v1749, 1.442695
      %v1751 = vpow.pop %v1750
      %v1752 = vadd.f32 %v1751, 1.0
      %v1753 = vrcp.pop %v1752
      %v1754 = vmul.f32 1.0, %v1753
      %1755 = vst [vmem:[%s465] sm:$0x1] %v1754
      %s1756 = smul.u32 %s31, 2
      %s1757 = sadd.s32 %s1756, %s32
      %p1758 = scmp.lt.s32.totalorder %s1757, 1
      %s1759 = scalar_select %p1758, %s1757, 1
      %s1760 = scalar_lea.vmem %s14, %s1759
      // Predicated region
      $region81: #{gnn_forward_pallas.1} parent=75 // pred_check
        %p1761 = pneg %p355
      $region82: #{gnn_forward_pallas.1} parent=75 // pred_check_branch
        %1763 = sbr.rel (%p1761) target = $region84
      $region83: #{gnn_forward_pallas.1} parent=75 // pred_region
        %s1764 = smul.u32 %s31, 2
        %s1765 = sadd.s32 %s1764, %s32
      $region84: #{gnn_forward_pallas.1} parent=75 // pred_fallthru
        _
    $region76: #{gnn_forward_pallas.1} parent=5 // pred_fallthru
      _
    %p1766 = scmp.le.s32.totalorder 2, %s22
    // Predicated region
    $region85: #{gnn_forward_pallas.1} parent=5 // pred_check
      %p1767 = pneg %p1766
    $region86: #{gnn_forward_pallas.1} parent=5 // pred_check_branch
      %1769 = sbr.rel (%p1767) target = $region88
    $region87: #{gnn_forward_pallas.1} parent=5 // pred_region
      %s1770 = ssub.s32 %s22, 2
      // Predicated region
      $region89: #{gnn_forward_pallas.1} parent=87 // pred_check
        %p1771 = pneg %p361
      $region90: #{gnn_forward_pallas.1} parent=87 // pred_check_branch
        %1773 = sbr.rel (%p1771) target = $region92
      $region91: #{gnn_forward_pallas.1} parent=87 // pred_region
        %s1774 = smul.u32 %s33, 2
        %s1775 = sadd.s32 %s1774, %s34
        %p1776 = scmp.lt.s32.totalorder %s1775, 1
        %s1777 = scalar_select %p1776, %s1775, 1
        %s1778 = scalar_lea.vmem %s14, %s1777
      $region92: #{gnn_forward_pallas.1} parent=87 // pred_fallthru
        _
    $region88: #{gnn_forward_pallas.1} parent=5 // pred_fallthru
      _
  $region6: #{gnn_forward_pallas.1} parent=0 // loop_footer
    %s26 = sadd.s32 1, %s22
  $region7: #{gnn_forward_pallas.1} parent=0 // loop_footer_branch
    %21 = sbr.rel target = $region3
  $region8: #{gnn_forward_pallas.1} parent=0 // loop_exit
    _

</llo_original>
